<compile_context>
chip_gen: v7x
topology: tpu7x:2x2x1
jax: 0.10.0
libtpu: 0.0.40
codegen_flags: <defaults>
</compile_context>

<pallas_src>
import functools

import numpy as np
import jax
import jax.numpy as jnp
from jax.experimental import pallas as pl
from jax.experimental.pallas import tpu as pltpu


def one_conv_kernel(mask_ref, x_ref, w1_ref, b1_ref, al_ref, w2_ref, b2_ref,
                    s1_ref, s2_ref, o_ref, *scratch, W, G, Cin, use_mxu):
    # mask_ref: (9, LW)     f32 border masks (1 = tap valid), per-image, resident
    # x_ref   : (Cp, LW)    input slab, channels zero-padded to Cp (mult. of 8)
    # w1_ref  : (Gp, 9*Cp)  conv  weights, column = tap*Cp + cin  (zero-padded)
    # b1_ref  : (Gp, 1)     conv  bias
    # al_ref  : (Gp, 1)     PReLU per-channel slopes
    # w2_ref  : (Cp, 9*Gp)  conv1 weights, column = tap*Gp + g    (zero-padded)
    # b2_ref  : (Cp, 1)     conv1 bias
    # s1/s2   : (1,) f32 SMEM scalars (Scale modules)
    # o_ref   : (Cin, LW)   lane-dense output slab
    # scratch : im2col VMEM buffers (MXU path only)
    Cp, LW = x_ref.shape
    Gp = al_ref.shape[0]

    x = x_ref[...]                                    # (Cp, LW)

    taps = [(dy, dx) for dy in (-1, 0, 1) for dx in (-1, 0, 1)]

    def tap(arr, t):
        # arr[:, p] -> arr at spatial offset (dy, dx), zero outside each image.
        dy, dx = taps[t]
        if dy == 0 and dx == 0:
            return arr
        shift = (-(dy * W + dx)) % LW                 # static lane rotation (XLU)
        return pltpu.roll(arr, shift, 1) * mask_ref[t:t + 1, :]

    # ---- conv: Cin -> G ----
    if use_mxu:
        im1_ref, im2_ref = scratch
        for t in range(9):                            # 8-sublane-aligned stores
            im1_ref[t * Cp:(t + 1) * Cp, :] = tap(x, t)
        y = jnp.dot(w1_ref[...], im1_ref[...],
                    preferred_element_type=jnp.float32,
                    precision=jax.lax.Precision.HIGHEST)
    else:
        w1 = w1_ref[...]
        y = jnp.zeros((Gp, LW), jnp.float32)
        for t in range(9):
            xs = tap(x, t)
            for c in range(Cin):
                col = t * Cp + c
                y = y + w1[:, col:col + 1] * xs[c:c + 1, :]
    y = y + b1_ref[...]

    # ---- PReLU (per-channel slope) ----
    a = jnp.where(y > 0, y, y * al_ref[...])          # (Gp, LW)

    # ---- conv1: G -> Cin ----
    if use_mxu:
        for t in range(9):
            im2_ref[t * Gp:(t + 1) * Gp, :] = tap(a, t)
        z = jnp.dot(w2_ref[...], im2_ref[...],
                    preferred_element_type=jnp.float32,
                    precision=jax.lax.Precision.HIGHEST)
    else:
        w2 = w2_ref[...]
        z = jnp.zeros((Cp, LW), jnp.float32)
        for t in range(9):
            ys = tap(a, t)
            for g in range(G):
                col = t * Gp + g
                z = z + w2[:, col:col + 1] * ys[g:g + 1, :]
    z = z + b2_ref[...]

    # ---- scaled residual: weight1(x) + weight2(conv1(...)) ----
    res = s1_ref[0] * x + s2_ref[0] * z               # (Cp, LW)
    o_ref[...] = res[:Cin, :].astype(o_ref.dtype)


def _round_up(v, m):
    return (v + m - 1) // m * m


@functools.partial(jax.jit, static_argnames=("use_mxu",))
def one_conv_forward(x_nchw, w1, b1, alpha, w2, b2, scale1, scale2,
                     use_mxu=True):
    """x_nchw: (N, Cin, H, W) float32  ->  (N, Cin, H, W) float32."""
    N, Cin, H, W = x_nchw.shape
    G = w1.shape[-1]
    P = H * W
    Cp = _round_up(Cin, 8)                 # sublane-aligned channel counts
    Gp = _round_up(G, 8)

    # Images per grid step: fat lane slabs, but keep >=2 grid steps whenever
    # N >= 2 so v7x can shard the slabs across both TensorCores.
    B = max(1, min(16, N // 2)) if N >= 2 else 1
    if (B * P) % 128 != 0:                 # multi-block lane width must stay aligned
        B = N
    num_blocks = pl.cdiv(N, B)
    Ntot = num_blocks * B
    LW = B * P

    f32 = jnp.float32

    # ---- activations: (N,Cin,H,W) -> (Cp, Ntot*P), zero-padded ----
    xf = jnp.transpose(x_nchw.reshape(N, Cin, P), (1, 0, 2)).reshape(Cin, N * P)
    xf = jnp.pad(xf.astype(f32), ((0, Cp - Cin), (0, (Ntot - N) * P)))

    # ---- weights repacked to (out, 9 * padded_in); padding columns are 0 ----
    w1r = jnp.transpose(w1, (3, 0, 1, 2)).reshape(G, 9, Cin).astype(f32)
    w1r = jnp.pad(w1r, ((0, Gp - G), (0, 0), (0, Cp - Cin))).reshape(Gp, 9 * Cp)
    w2r = jnp.transpose(w2, (3, 0, 1, 2)).reshape(Cin, 9, G).astype(f32)
    w2r = jnp.pad(w2r, ((0, Cp - Cin), (0, 0), (0, Gp - G))).reshape(Cp, 9 * Gp)
    b1r = jnp.pad(b1.reshape(G, 1).astype(f32), ((0, Gp - G), (0, 0)))
    alr = jnp.pad(alpha.reshape(G, 1).astype(f32), ((0, Gp - G), (0, 0)))
    b2r = jnp.pad(b2.reshape(Cin, 1).astype(f32), ((0, Cp - Cin), (0, 0)))
    s1 = scale1.reshape(1).astype(f32)
    s2 = scale2.reshape(1).astype(f32)

    # ---- static per-image border masks (hoisted out of the kernel body) ----
    q = np.arange(LW) % P                  # per-image flattened position
    hh, ww = q // W, q % W
    mk = np.ones((9, LW), np.float32)
    tap_offsets = [(dy, dx) for dy in (-1, 0, 1) for dx in (-1, 0, 1)]
    for t, (dy, dx) in enumerate(tap_offsets):
        m = np.ones(LW, np.bool_)
        if dy < 0:
            m &= hh >= -dy
        if dy > 0:
            m &= hh < H - dy
        if dx < 0:
            m &= ww >= -dx
        if dx > 0:
            m &= ww < W - dx
        mk[t] = m
    mask = jnp.asarray(mk)

    kernel = functools.partial(one_conv_kernel, W=W, G=G, Cin=Cin,
                               use_mxu=use_mxu)
    scratch = ([pltpu.VMEM((9 * Cp, LW), f32),       # conv  im2col (tap-stacked)
                pltpu.VMEM((9 * Gp, LW), f32)]       # conv1 im2col
               if use_mxu else [])

    out = pl.pallas_call(
        kernel,
        out_shape=jax.ShapeDtypeStruct((Cin, Ntot * P), f32),
        grid=(num_blocks,),
        in_specs=[
            pl.BlockSpec((9, LW), lambda i: (0, 0)),          # masks (resident)
            pl.BlockSpec((Cp, LW), lambda i: (0, i)),         # x lane-slab
            pl.BlockSpec((Gp, 9 * Cp), lambda i: (0, 0)),     # conv  weights
            pl.BlockSpec((Gp, 1), lambda i: (0, 0)),          # conv  bias
            pl.BlockSpec((Gp, 1), lambda i: (0, 0)),          # PReLU slopes
            pl.BlockSpec((Cp, 9 * Gp), lambda i: (0, 0)),     # conv1 weights
            pl.BlockSpec((Cp, 1), lambda i: (0, 0)),          # conv1 bias
            pl.BlockSpec(memory_space=pltpu.MemorySpace.SMEM),  # scale1
            pl.BlockSpec(memory_space=pltpu.MemorySpace.SMEM),  # scale2
        ],
        out_specs=pl.BlockSpec((Cin, LW), lambda i: (0, i)),
        scratch_shapes=scratch,
        compiler_params=pltpu.CompilerParams(
            dimension_semantics=("parallel",)),    # v7x: slabs across 2 TCs
    )(mask, xf, w1r, b1r, alr, w2r, b2r, s1, s2)

    out = out[:, :N * P].reshape(Cin, N, P)
    return jnp.transpose(out, (1, 0, 2)).reshape(N, Cin, H, W).astype(x_nchw.dtype)


def _reference(x_nchw, w1, b1, alpha, w2, b2, scale1, scale2):
    """Pure-JAX reference (matches PyTorch semantics) for validation."""
    dn = ('NCHW', 'HWIO', 'NCHW')
    hp = jax.lax.Precision.HIGHEST
    y = jax.lax.conv_general_dilated(x_nchw, w1, (1, 1), 'SAME',
                                     dimension_numbers=dn, precision=hp)
    y = y + b1[None, :, None, None]
    y = jnp.where(y > 0, y, alpha[None, :, None, None] * y)        # PReLU
    z = jax.lax.conv_general_dilated(y, w2, (1, 1), 'SAME',
                                     dimension_numbers=dn, precision=hp)
    z = z + b2[None, :, None, None]
    return scale1[0] * x_nchw + scale2[0] * z


if __name__ == "__main__":
    # module config: inchanels=4, growth_rate=8, kernel_size=3, relu=True
    N, Cin, H, W = 2, 4, 16, 16
    G = 8

    key = jax.random.PRNGKey(0)
    k = jax.random.split(key, 6)
    x = jax.random.normal(k[0], (N, Cin, H, W), dtype=jnp.float32)

    # deterministic synthetic parameters (HWIO conv weight layout)
    w1 = 0.1 * jax.random.normal(k[1], (3, 3, Cin, G), dtype=jnp.float32)
    b1 = 0.1 * jax.random.normal(k[2], (G,), dtype=jnp.float32)
    alpha = jnp.full((G,), 0.25, dtype=jnp.float32)                # PReLU default
    w2 = 0.1 * jax.random.normal(k[3], (3, 3, G, Cin), dtype=jnp.float32)
    b2 = 0.1 * jax.random.normal(k[4], (Cin,), dtype=jnp.float32)
    scale1 = jnp.array([1.0], dtype=jnp.float32)                   # Scale(1)
    scale2 = jnp.array([1.0], dtype=jnp.float32)                   # Scale(1)

    ref = _reference(x, w1, b1, alpha, w2, b2, scale1, scale2)

    # MXU im2col path (default; preferred on v6e / v7x)
    out = one_conv_forward(x, w1, b1, alpha, w2, b2, scale1, scale2)
    out = jax.block_until_ready(out)
    assert out.shape == (N, Cin, H, W)
    assert jnp.allclose(out, ref, rtol=1e-4, atol=1e-4), "MXU path mismatch"

    # VPU broadcast-FMA fallback (the per-generation option for v5e)
    out_vpu = jax.block_until_ready(
        one_conv_forward(x, w1, b1, alpha, w2, b2, scale1, scale2,
                         use_mxu=False))
    assert jnp.allclose(out_vpu, ref, rtol=1e-4, atol=1e-4), "VPU path mismatch"

    print("KERNEL_OK")
</pallas_src>

<mosaic_0001>
module attributes {stable_mosaic.version = 11 : i64} {
  func.func @one_conv_kernel(%arg0: i32, %arg1: memref<9x256xf32, #tpu.memory_space<vmem>>, %arg2: memref<8x256xf32, #tpu.memory_space<vmem>>, %arg3: memref<8x72xf32, #tpu.memory_space<vmem>>, %arg4: memref<8x1xf32, #tpu.memory_space<vmem>>, %arg5: memref<8x1xf32, #tpu.memory_space<vmem>>, %arg6: memref<8x72xf32, #tpu.memory_space<vmem>>, %arg7: memref<8x1xf32, #tpu.memory_space<vmem>>, %arg8: memref<1xf32, #tpu.memory_space<smem>>, %arg9: memref<1xf32, #tpu.memory_space<smem>>, %arg10: memref<4x256xf32, #tpu.memory_space<vmem>>, %arg11: memref<72x256xf32, #tpu.memory_space<vmem>>, %arg12: memref<72x256xf32, #tpu.memory_space<vmem>>) attributes {dimension_semantics = [#tpu.dimension_semantics<parallel>], iteration_bounds = array<i64: 2>, scalar_prefetch = 0 : i64, scratch_operands = 2 : i64, tpu.core_type = #tpu.core_type<tc>, window_params = [{pipeline_mode = #tpu.pipeline_mode<synchronous>, transform_indices = @transform_0, window_bounds = array<i64: 9, 256>}, {transform_indices = @transform_1, window_bounds = array<i64: 8, 256>}, {pipeline_mode = #tpu.pipeline_mode<synchronous>, transform_indices = @transform_2, window_bounds = array<i64: 8, 72>}, {pipeline_mode = #tpu.pipeline_mode<synchronous>, transform_indices = @transform_3, window_bounds = array<i64: 8, 1>}, {pipeline_mode = #tpu.pipeline_mode<synchronous>, transform_indices = @transform_4, window_bounds = array<i64: 8, 1>}, {pipeline_mode = #tpu.pipeline_mode<synchronous>, transform_indices = @transform_5, window_bounds = array<i64: 8, 72>}, {pipeline_mode = #tpu.pipeline_mode<synchronous>, transform_indices = @transform_6, window_bounds = array<i64: 8, 1>}, {transform_indices = @transform_7, window_bounds = array<i64: 1>}, {transform_indices = @transform_8, window_bounds = array<i64: 1>}, {transform_indices = @transform_9, window_bounds = array<i64: 4, 256>}]} {
    %c0 = arith.constant 0 : index
    %c0_0 = arith.constant 0 : index
    %0 = vector.load %arg2[%c0, %c0_0] : memref<8x256xf32, #tpu.memory_space<vmem>>, vector<8x256xf32>
    %c17_i32 = arith.constant 17 : i32
    %1 = tpu.dynamic_rotate %0 by %c17_i32 dim 1 : vector<8x256xf32>, i32 -> vector<8x256xf32>
    %c0_1 = arith.constant 0 : index
    %c0_2 = arith.constant 0 : index
    %2 = vector.load %arg1[%c0_1, %c0_2] : memref<9x256xf32, #tpu.memory_space<vmem>>, vector<1x256xf32>
    %3 = vector.broadcast %2 : vector<1x256xf32> to vector<8x256xf32>
    %4 = arith.mulf %1, %3 : vector<8x256xf32>
    %c0_3 = arith.constant 0 : index
    %c0_4 = arith.constant 0 : index
    %5 = vector.load %arg11[%c0_3, %c0_4] : memref<72x256xf32, #tpu.memory_space<vmem>>, vector<8x256xf32>
    tpu.vector_store %arg11[%c0_3, %c0_4], %4 {strides = array<i32>} : memref<72x256xf32, #tpu.memory_space<vmem>>, vector<8x256xf32>,
    %c16_i32 = arith.constant 16 : i32
    %6 = tpu.dynamic_rotate %0 by %c16_i32 dim 1 : vector<8x256xf32>, i32 -> vector<8x256xf32>
    %c1 = arith.constant 1 : index
    %c0_5 = arith.constant 0 : index
    %7 = vector.load %arg1[%c1, %c0_5] : memref<9x256xf32, #tpu.memory_space<vmem>>, vector<1x256xf32>
    %8 = vector.broadcast %7 : vector<1x256xf32> to vector<8x256xf32>
    %9 = arith.mulf %6, %8 : vector<8x256xf32>
    %c8 = arith.constant 8 : index
    %c0_6 = arith.constant 0 : index
    %10 = vector.load %arg11[%c8, %c0_6] : memref<72x256xf32, #tpu.memory_space<vmem>>, vector<8x256xf32>
    tpu.vector_store %arg11[%c8, %c0_6], %9 {strides = array<i32>} : memref<72x256xf32, #tpu.memory_space<vmem>>, vector<8x256xf32>,
    %c15_i32 = arith.constant 15 : i32
    %11 = tpu.dynamic_rotate %0 by %c15_i32 dim 1 : vector<8x256xf32>, i32 -> vector<8x256xf32>
    %c2 = arith.constant 2 : index
    %c0_7 = arith.constant 0 : index
    %12 = vector.load %arg1[%c2, %c0_7] : memref<9x256xf32, #tpu.memory_space<vmem>>, vector<1x256xf32>
    %13 = vector.broadcast %12 : vector<1x256xf32> to vector<8x256xf32>
    %14 = arith.mulf %11, %13 : vector<8x256xf32>
    %c16 = arith.constant 16 : index
    %c0_8 = arith.constant 0 : index
    %15 = vector.load %arg11[%c16, %c0_8] : memref<72x256xf32, #tpu.memory_space<vmem>>, vector<8x256xf32>
    tpu.vector_store %arg11[%c16, %c0_8], %14 {strides = array<i32>} : memref<72x256xf32, #tpu.memory_space<vmem>>, vector<8x256xf32>,
    %c1_i32 = arith.constant 1 : i32
    %16 = tpu.dynamic_rotate %0 by %c1_i32 dim 1 : vector<8x256xf32>, i32 -> vector<8x256xf32>
    %c3 = arith.constant 3 : index
    %c0_9 = arith.constant 0 : index
    %17 = vector.load %arg1[%c3, %c0_9] : memref<9x256xf32, #tpu.memory_space<vmem>>, vector<1x256xf32>
    %18 = vector.broadcast %17 : vector<1x256xf32> to vector<8x256xf32>
    %19 = arith.mulf %16, %18 : vector<8x256xf32>
    %c24 = arith.constant 24 : index
    %c0_10 = arith.constant 0 : index
    %20 = vector.load %arg11[%c24, %c0_10] : memref<72x256xf32, #tpu.memory_space<vmem>>, vector<8x256xf32>
    tpu.vector_store %arg11[%c24, %c0_10], %19 {strides = array<i32>} : memref<72x256xf32, #tpu.memory_space<vmem>>, vector<8x256xf32>,
    %c32 = arith.constant 32 : index
    %c0_11 = arith.constant 0 : index
    %21 = vector.load %arg11[%c32, %c0_11] : memref<72x256xf32, #tpu.memory_space<vmem>>, vector<8x256xf32>
    tpu.vector_store %arg11[%c32, %c0_11], %0 {strides = array<i32>} : memref<72x256xf32, #tpu.memory_space<vmem>>, vector<8x256xf32>,
    %c255_i32 = arith.constant 255 : i32
    %22 = tpu.dynamic_rotate %0 by %c255_i32 dim 1 : vector<8x256xf32>, i32 -> vector<8x256xf32>
    %c5 = arith.constant 5 : index
    %c0_12 = arith.constant 0 : index
    %23 = vector.load %arg1[%c5, %c0_12] : memref<9x256xf32, #tpu.memory_space<vmem>>, vector<1x256xf32>
    %24 = vector.broadcast %23 : vector<1x256xf32> to vector<8x256xf32>
    %25 = arith.mulf %22, %24 : vector<8x256xf32>
    %c40 = arith.constant 40 : index
    %c0_13 = arith.constant 0 : index
    %26 = vector.load %arg11[%c40, %c0_13] : memref<72x256xf32, #tpu.memory_space<vmem>>, vector<8x256xf32>
    tpu.vector_store %arg11[%c40, %c0_13], %25 {strides = array<i32>} : memref<72x256xf32, #tpu.memory_space<vmem>>, vector<8x256xf32>,
    %c241_i32 = arith.constant 241 : i32
    %27 = tpu.dynamic_rotate %0 by %c241_i32 dim 1 : vector<8x256xf32>, i32 -> vector<8x256xf32>
    %c6 = arith.constant 6 : index
    %c0_14 = arith.constant 0 : index
    %28 = vector.load %arg1[%c6, %c0_14] : memref<9x256xf32, #tpu.memory_space<vmem>>, vector<1x256xf32>
    %29 = vector.broadcast %28 : vector<1x256xf32> to vector<8x256xf32>
    %30 = arith.mulf %27, %29 : vector<8x256xf32>
    %c48 = arith.constant 48 : index
    %c0_15 = arith.constant 0 : index
    %31 = vector.load %arg11[%c48, %c0_15] : memref<72x256xf32, #tpu.memory_space<vmem>>, vector<8x256xf32>
    tpu.vector_store %arg11[%c48, %c0_15], %30 {strides = array<i32>} : memref<72x256xf32, #tpu.memory_space<vmem>>, vector<8x256xf32>,
    %c240_i32 = arith.constant 240 : i32
    %32 = tpu.dynamic_rotate %0 by %c240_i32 dim 1 : vector<8x256xf32>, i32 -> vector<8x256xf32>
    %c7 = arith.constant 7 : index
    %c0_16 = arith.constant 0 : index
    %33 = vector.load %arg1[%c7, %c0_16] : memref<9x256xf32, #tpu.memory_space<vmem>>, vector<1x256xf32>
    %34 = vector.broadcast %33 : vector<1x256xf32> to vector<8x256xf32>
    %35 = arith.mulf %32, %34 : vector<8x256xf32>
    %c56 = arith.constant 56 : index
    %c0_17 = arith.constant 0 : index
    %36 = vector.load %arg11[%c56, %c0_17] : memref<72x256xf32, #tpu.memory_space<vmem>>, vector<8x256xf32>
    tpu.vector_store %arg11[%c56, %c0_17], %35 {strides = array<i32>} : memref<72x256xf32, #tpu.memory_space<vmem>>, vector<8x256xf32>,
    %c239_i32 = arith.constant 239 : i32
    %37 = tpu.dynamic_rotate %0 by %c239_i32 dim 1 : vector<8x256xf32>, i32 -> vector<8x256xf32>
    %c8_18 = arith.constant 8 : index
    %c0_19 = arith.constant 0 : index
    %38 = vector.load %arg1[%c8_18, %c0_19] : memref<9x256xf32, #tpu.memory_space<vmem>>, vector<1x256xf32>
    %39 = vector.broadcast %38 : vector<1x256xf32> to vector<8x256xf32>
    %40 = arith.mulf %37, %39 : vector<8x256xf32>
    %c64 = arith.constant 64 : index
    %c0_20 = arith.constant 0 : index
    %41 = vector.load %arg11[%c64, %c0_20] : memref<72x256xf32, #tpu.memory_space<vmem>>, vector<8x256xf32>
    tpu.vector_store %arg11[%c64, %c0_20], %40 {strides = array<i32>} : memref<72x256xf32, #tpu.memory_space<vmem>>, vector<8x256xf32>,
    %c0_21 = arith.constant 0 : index
    %c0_22 = arith.constant 0 : index
    %42 = vector.load %arg3[%c0_21, %c0_22] : memref<8x72xf32, #tpu.memory_space<vmem>>, vector<8x72xf32>
    %c0_23 = arith.constant 0 : index
    %c0_24 = arith.constant 0 : index
    %43 = vector.load %arg11[%c0_23, %c0_24] : memref<72x256xf32, #tpu.memory_space<vmem>>, vector<72x256xf32>
    %cst = arith.constant dense<0.000000e+00> : vector<8x256xf32>
    %44 = tpu.matmul %42, %43, %cst {dimension_numbers = #tpu.dot_dimension_numbers<[1], [0], [0], [1], [0, 0, 1, 1], [], []>, precision = #tpu.contract_precision<fp32>} : vector<8x72xf32>, vector<72x256xf32>, vector<8x256xf32> -> vector<8x256xf32>
    %c0_25 = arith.constant 0 : index
    %c0_26 = arith.constant 0 : index
    %45 = vector.load %arg4[%c0_25, %c0_26] : memref<8x1xf32, #tpu.memory_space<vmem>>, vector<8x1xf32>
    %46 = vector.broadcast %45 : vector<8x1xf32> to vector<8x256xf32>
    %47 = arith.addf %44, %46 : vector<8x256xf32>
    %cst_27 = arith.constant 0.000000e+00 : f32
    %48 = vector.broadcast %cst_27 : f32 to vector<8x256xf32>
    %49 = arith.cmpf ogt, %47, %48 : vector<8x256xf32>
    %c0_28 = arith.constant 0 : index
    %c0_29 = arith.constant 0 : index
    %50 = vector.load %arg5[%c0_28, %c0_29] : memref<8x1xf32, #tpu.memory_space<vmem>>, vector<8x1xf32>
    %51 = vector.broadcast %50 : vector<8x1xf32> to vector<8x256xf32>
    %52 = arith.mulf %47, %51 : vector<8x256xf32>
    %53 = arith.select %49, %47, %52 : vector<8x256xi1>, vector<8x256xf32>
    %c17_i32_30 = arith.constant 17 : i32
    %54 = tpu.dynamic_rotate %53 by %c17_i32_30 dim 1 : vector<8x256xf32>, i32 -> vector<8x256xf32>
    %c0_31 = arith.constant 0 : index
    %c0_32 = arith.constant 0 : index
    %55 = vector.load %arg1[%c0_31, %c0_32] : memref<9x256xf32, #tpu.memory_space<vmem>>, vector<1x256xf32>
    %56 = vector.broadcast %55 : vector<1x256xf32> to vector<8x256xf32>
    %57 = arith.mulf %54, %56 : vector<8x256xf32>
    %c0_33 = arith.constant 0 : index
    %c0_34 = arith.constant 0 : index
    %58 = vector.load %arg12[%c0_33, %c0_34] : memref<72x256xf32, #tpu.memory_space<vmem>>, vector<8x256xf32>
    tpu.vector_store %arg12[%c0_33, %c0_34], %57 {strides = array<i32>} : memref<72x256xf32, #tpu.memory_space<vmem>>, vector<8x256xf32>,
    %c16_i32_35 = arith.constant 16 : i32
    %59 = tpu.dynamic_rotate %53 by %c16_i32_35 dim 1 : vector<8x256xf32>, i32 -> vector<8x256xf32>
    %c1_36 = arith.constant 1 : index
    %c0_37 = arith.constant 0 : index
    %60 = vector.load %arg1[%c1_36, %c0_37] : memref<9x256xf32, #tpu.memory_space<vmem>>, vector<1x256xf32>
    %61 = vector.broadcast %60 : vector<1x256xf32> to vector<8x256xf32>
    %62 = arith.mulf %59, %61 : vector<8x256xf32>
    %c8_38 = arith.constant 8 : index
    %c0_39 = arith.constant 0 : index
    %63 = vector.load %arg12[%c8_38, %c0_39] : memref<72x256xf32, #tpu.memory_space<vmem>>, vector<8x256xf32>
    tpu.vector_store %arg12[%c8_38, %c0_39], %62 {strides = array<i32>} : memref<72x256xf32, #tpu.memory_space<vmem>>, vector<8x256xf32>,
    %c15_i32_40 = arith.constant 15 : i32
    %64 = tpu.dynamic_rotate %53 by %c15_i32_40 dim 1 : vector<8x256xf32>, i32 -> vector<8x256xf32>
    %c2_41 = arith.constant 2 : index
    %c0_42 = arith.constant 0 : index
    %65 = vector.load %arg1[%c2_41, %c0_42] : memref<9x256xf32, #tpu.memory_space<vmem>>, vector<1x256xf32>
    %66 = vector.broadcast %65 : vector<1x256xf32> to vector<8x256xf32>
    %67 = arith.mulf %64, %66 : vector<8x256xf32>
    %c16_43 = arith.constant 16 : index
    %c0_44 = arith.constant 0 : index
    %68 = vector.load %arg12[%c16_43, %c0_44] : memref<72x256xf32, #tpu.memory_space<vmem>>, vector<8x256xf32>
    tpu.vector_store %arg12[%c16_43, %c0_44], %67 {strides = array<i32>} : memref<72x256xf32, #tpu.memory_space<vmem>>, vector<8x256xf32>,
    %c1_i32_45 = arith.constant 1 : i32
    %69 = tpu.dynamic_rotate %53 by %c1_i32_45 dim 1 : vector<8x256xf32>, i32 -> vector<8x256xf32>
    %c3_46 = arith.constant 3 : index
    %c0_47 = arith.constant 0 : index
    %70 = vector.load %arg1[%c3_46, %c0_47] : memref<9x256xf32, #tpu.memory_space<vmem>>, vector<1x256xf32>
    %71 = vector.broadcast %70 : vector<1x256xf32> to vector<8x256xf32>
    %72 = arith.mulf %69, %71 : vector<8x256xf32>
    %c24_48 = arith.constant 24 : index
    %c0_49 = arith.constant 0 : index
    %73 = vector.load %arg12[%c24_48, %c0_49] : memref<72x256xf32, #tpu.memory_space<vmem>>, vector<8x256xf32>
    tpu.vector_store %arg12[%c24_48, %c0_49], %72 {strides = array<i32>} : memref<72x256xf32, #tpu.memory_space<vmem>>, vector<8x256xf32>,
    %c32_50 = arith.constant 32 : index
    %c0_51 = arith.constant 0 : index
    %74 = vector.load %arg12[%c32_50, %c0_51] : memref<72x256xf32, #tpu.memory_space<vmem>>, vector<8x256xf32>
    tpu.vector_store %arg12[%c32_50, %c0_51], %53 {strides = array<i32>} : memref<72x256xf32, #tpu.memory_space<vmem>>, vector<8x256xf32>,
    %c255_i32_52 = arith.constant 255 : i32
    %75 = tpu.dynamic_rotate %53 by %c255_i32_52 dim 1 : vector<8x256xf32>, i32 -> vector<8x256xf32>
    %c5_53 = arith.constant 5 : index
    %c0_54 = arith.constant 0 : index
    %76 = vector.load %arg1[%c5_53, %c0_54] : memref<9x256xf32, #tpu.memory_space<vmem>>, vector<1x256xf32>
    %77 = vector.broadcast %76 : vector<1x256xf32> to vector<8x256xf32>
    %78 = arith.mulf %75, %77 : vector<8x256xf32>
    %c40_55 = arith.constant 40 : index
    %c0_56 = arith.constant 0 : index
    %79 = vector.load %arg12[%c40_55, %c0_56] : memref<72x256xf32, #tpu.memory_space<vmem>>, vector<8x256xf32>
    tpu.vector_store %arg12[%c40_55, %c0_56], %78 {strides = array<i32>} : memref<72x256xf32, #tpu.memory_space<vmem>>, vector<8x256xf32>,
    %c241_i32_57 = arith.constant 241 : i32
    %80 = tpu.dynamic_rotate %53 by %c241_i32_57 dim 1 : vector<8x256xf32>, i32 -> vector<8x256xf32>
    %c6_58 = arith.constant 6 : index
    %c0_59 = arith.constant 0 : index
    %81 = vector.load %arg1[%c6_58, %c0_59] : memref<9x256xf32, #tpu.memory_space<vmem>>, vector<1x256xf32>
    %82 = vector.broadcast %81 : vector<1x256xf32> to vector<8x256xf32>
    %83 = arith.mulf %80, %82 : vector<8x256xf32>
    %c48_60 = arith.constant 48 : index
    %c0_61 = arith.constant 0 : index
    %84 = vector.load %arg12[%c48_60, %c0_61] : memref<72x256xf32, #tpu.memory_space<vmem>>, vector<8x256xf32>
    tpu.vector_store %arg12[%c48_60, %c0_61], %83 {strides = array<i32>} : memref<72x256xf32, #tpu.memory_space<vmem>>, vector<8x256xf32>,
    %c240_i32_62 = arith.constant 240 : i32
    %85 = tpu.dynamic_rotate %53 by %c240_i32_62 dim 1 : vector<8x256xf32>, i32 -> vector<8x256xf32>
    %c7_63 = arith.constant 7 : index
    %c0_64 = arith.constant 0 : index
    %86 = vector.load %arg1[%c7_63, %c0_64] : memref<9x256xf32, #tpu.memory_space<vmem>>, vector<1x256xf32>
    %87 = vector.broadcast %86 : vector<1x256xf32> to vector<8x256xf32>
    %88 = arith.mulf %85, %87 : vector<8x256xf32>
    %c56_65 = arith.constant 56 : index
    %c0_66 = arith.constant 0 : index
    %89 = vector.load %arg12[%c56_65, %c0_66] : memref<72x256xf32, #tpu.memory_space<vmem>>, vector<8x256xf32>
    tpu.vector_store %arg12[%c56_65, %c0_66], %88 {strides = array<i32>} : memref<72x256xf32, #tpu.memory_space<vmem>>, vector<8x256xf32>,
    %c239_i32_67 = arith.constant 239 : i32
    %90 = tpu.dynamic_rotate %53 by %c239_i32_67 dim 1 : vector<8x256xf32>, i32 -> vector<8x256xf32>
    %c8_68 = arith.constant 8 : index
    %c0_69 = arith.constant 0 : index
    %91 = vector.load %arg1[%c8_68, %c0_69] : memref<9x256xf32, #tpu.memory_space<vmem>>, vector<1x256xf32>
    %92 = vector.broadcast %91 : vector<1x256xf32> to vector<8x256xf32>
    %93 = arith.mulf %90, %92 : vector<8x256xf32>
    %c64_70 = arith.constant 64 : index
    %c0_71 = arith.constant 0 : index
    %94 = vector.load %arg12[%c64_70, %c0_71] : memref<72x256xf32, #tpu.memory_space<vmem>>, vector<8x256xf32>
    tpu.vector_store %arg12[%c64_70, %c0_71], %93 {strides = array<i32>} : memref<72x256xf32, #tpu.memory_space<vmem>>, vector<8x256xf32>,
    %c0_72 = arith.constant 0 : index
    %c0_73 = arith.constant 0 : index
    %95 = vector.load %arg6[%c0_72, %c0_73] : memref<8x72xf32, #tpu.memory_space<vmem>>, vector<8x72xf32>
    %c0_74 = arith.constant 0 : index
    %c0_75 = arith.constant 0 : index
    %96 = vector.load %arg12[%c0_74, %c0_75] : memref<72x256xf32, #tpu.memory_space<vmem>>, vector<72x256xf32>
    %cst_76 = arith.constant dense<0.000000e+00> : vector<8x256xf32>
    %97 = tpu.matmul %95, %96, %cst_76 {dimension_numbers = #tpu.dot_dimension_numbers<[1], [0], [0], [1], [0, 0, 1, 1], [], []>, precision = #tpu.contract_precision<fp32>} : vector<8x72xf32>, vector<72x256xf32>, vector<8x256xf32> -> vector<8x256xf32>
    %c0_77 = arith.constant 0 : index
    %c0_78 = arith.constant 0 : index
    %98 = vector.load %arg7[%c0_77, %c0_78] : memref<8x1xf32, #tpu.memory_space<vmem>>, vector<8x1xf32>
    %99 = vector.broadcast %98 : vector<8x1xf32> to vector<8x256xf32>
    %100 = arith.addf %97, %99 : vector<8x256xf32>
    %c0_79 = arith.constant 0 : index
    %101 = memref.load %arg8[%c0_79] : memref<1xf32, #tpu.memory_space<smem>>
    %102 = vector.broadcast %101 : f32 to vector<8x256xf32>
    %103 = arith.mulf %102, %0 : vector<8x256xf32>
    %c0_80 = arith.constant 0 : index
    %104 = memref.load %arg9[%c0_80] : memref<1xf32, #tpu.memory_space<smem>>
    %105 = vector.broadcast %104 : f32 to vector<8x256xf32>
    %106 = arith.mulf %105, %100 : vector<8x256xf32>
    %107 = arith.addf %103, %106 : vector<8x256xf32>
    %108 = vector.extract_strided_slice %107 {offsets = [0, 0], sizes = [4, 256], strides = [1, 1]} : vector<8x256xf32> to vector<4x256xf32>
    %c0_81 = arith.constant 0 : index
    %c0_82 = arith.constant 0 : index
    %109 = vector.load %arg10[%c0_81, %c0_82] : memref<4x256xf32, #tpu.memory_space<vmem>>, vector<4x256xf32>
    tpu.vector_store %arg10[%c0_81, %c0_82], %108 {strides = array<i32>} : memref<4x256xf32, #tpu.memory_space<vmem>>, vector<4x256xf32>,
    return
  }
  func.func @transform_0(%arg0: i32) -> (i32, i32) {
    %c0_i32 = arith.constant 0 : i32
    %c0_i32_0 = arith.constant 0 : i32
    %c0_i32_1 = arith.constant 0 : i32
    return %c0_i32, %c0_i32_0 : i32, i32
  }
  func.func @transform_1(%arg0: i32) -> (i32, i32) {
    %c0_i32 = arith.constant 0 : i32
    %c0_i32_0 = arith.constant 0 : i32
    return %c0_i32, %arg0 : i32, i32
  }
  func.func @transform_2(%arg0: i32) -> (i32, i32) {
    %c0_i32 = arith.constant 0 : i32
    %c0_i32_0 = arith.constant 0 : i32
    %c0_i32_1 = arith.constant 0 : i32
    return %c0_i32, %c0_i32_0 : i32, i32
  }
  func.func @transform_3(%arg0: i32) -> (i32, i32) {
    %c0_i32 = arith.constant 0 : i32
    %c0_i32_0 = arith.constant 0 : i32
    %c0_i32_1 = arith.constant 0 : i32
    return %c0_i32, %c0_i32_0 : i32, i32
  }
  func.func @transform_4(%arg0: i32) -> (i32, i32) {
    %c0_i32 = arith.constant 0 : i32
    %c0_i32_0 = arith.constant 0 : i32
    %c0_i32_1 = arith.constant 0 : i32
    return %c0_i32, %c0_i32_0 : i32, i32
  }
  func.func @transform_5(%arg0: i32) -> (i32, i32) {
    %c0_i32 = arith.constant 0 : i32
    %c0_i32_0 = arith.constant 0 : i32
    %c0_i32_1 = arith.constant 0 : i32
    return %c0_i32, %c0_i32_0 : i32, i32
  }
  func.func @transform_6(%arg0: i32) -> (i32, i32) {
    %c0_i32 = arith.constant 0 : i32
    %c0_i32_0 = arith.constant 0 : i32
    %c0_i32_1 = arith.constant 0 : i32
    return %c0_i32, %c0_i32_0 : i32, i32
  }
  func.func @transform_7(%arg0: i32) -> i32 {
    %c0_i32 = arith.constant 0 : i32
    %c0_i32_0 = arith.constant 0 : i32
    return %c0_i32 : i32
  }
  func.func @transform_8(%arg0: i32) -> i32 {
    %c0_i32 = arith.constant 0 : i32
    %c0_i32_0 = arith.constant 0 : i32
    return %c0_i32 : i32
  }
  func.func @transform_9(%arg0: i32) -> (i32, i32) {
    %c0_i32 = arith.constant 0 : i32
    %c0_i32_0 = arith.constant 0 : i32
    return %c0_i32, %arg0 : i32, i32
  }
}

</mosaic_0001>

<llo_original>
// kernel: one_conv_forward.1
$region0: #{one_conv_forward.1}
  #allocation0 [shape = 'u32[]', space=smem, size = 0x4, offset = 0x4, fixed_abs, tag = 'smem constant byte address 0x4 - core index']
  #allocation1 [shape = 'u32[144,128]{1,0:T(1,128)}', space=vmem, size = 0x12000, scoped, tag = 'internal scratch']
  #allocation2 [shape = 'f32[72,256]{1,0:T(8,128)}', space=vmem, size = 0x12000, scoped, tag = 'scratch operand']
  #allocation3 [shape = 'f32[72,256]{1,0:T(8,128)}', space=vmem, size = 0x12000, scoped, tag = 'scratch operand']
  #allocation4 [shape = 'f32[1]{0:T(128)S(6)}', space=smem, size = 0x200, scoped, tag = 'scoped memory for one_conv_forward.1']
  #allocation5 [shape = 'f32[1]{0:T(128)S(6)}', space=smem, size = 0x200, scoped, tag = 'scoped memory for one_conv_forward.1']
  %s0 = inlined_call_operand.vmem [shape: f32[9,256], index: 0, kind: input, shape index: {}]
  %s1 = inlined_call_operand.vmem [shape: f32[8,512], index: 1, kind: input, shape index: {}]
  %s2 = inlined_call_operand.vmem [shape: f32[8,72], index: 2, kind: input, shape index: {}]
  %s3 = inlined_call_operand.vmem [shape: f32[8,1], index: 3, kind: input, shape index: {}]
  %s4 = inlined_call_operand.vmem [shape: f32[8,1], index: 4, kind: input, shape index: {}]
  %s5 = inlined_call_operand.vmem [shape: f32[8,72], index: 5, kind: input, shape index: {}]
  %s6 = inlined_call_operand.vmem [shape: f32[8,1], index: 6, kind: input, shape index: {}]
  %s7 = inlined_call_operand.<no memory space> [shape: f32[1], index: 7, kind: input, shape index: {}]
  %s8 = inlined_call_operand.<no memory space> [shape: f32[1], index: 8, kind: input, shape index: {}]
  %s9 = inlined_call_operand.vmem [shape: f32[4,512], index: 9, kind: output, shape index: {}]
  %s10 = sld [smem:[#allocation0]]
  $region69: #{one_conv_forward.1} parent=0
    _
  %s12 = ssub.s32 1, %s10
  %s13 = scalar_select 0, %s12, %s10
  %14 = sst [smem:[#allocation4]] %s7
  %15 = sst [smem:[#allocation5]] %s8
  loop: start=0, step=1, limit=4
  $region2: #{one_conv_forward.1} parent=0 // loop_pre_header
    _
  $region3: #{one_conv_forward.1} parent=0 // loop_header
    %s17 = sphi 0, %s21
    %p18 = scmp.ge.s32.totalorder %s17, 4
    %s25 = sphi 0, %s25
    %s27 = sphi 0, %s25
    %s28 = sphi 0, %s27
    %s42 = sphi 0, %s28
    %s48 = sphi 0, %s50
    %s51 = sphi 0, %s48
    %s52 = sphi 0, %s51
    %s68 = sphi 0, %s52
    %s72 = sphi 0, %s72
    %s74 = sphi 0, %s72
    %s75 = sphi 0, %s74
    %s89 = sphi 0, %s75
    %s93 = sphi 0, %s93
    %s95 = sphi 0, %s93
    %s96 = sphi 0, %s95
    %s110 = sphi 0, %s96
    %s114 = sphi 0, %s114
    %s116 = sphi 0, %s114
    %s117 = sphi 0, %s116
    %s131 = sphi 0, %s117
    %s135 = sphi 0, %s135
    %s137 = sphi 0, %s135
    %s138 = sphi 0, %s137
    %s152 = sphi 0, %s138
    %s156 = sphi 0, %s156
    %s158 = sphi 0, %s156
    %s159 = sphi 0, %s158
    %s173 = sphi 0, %s159
    %s177 = sphi 0, %s177
    %s179 = sphi 0, %s177
    %s180 = sphi 0, %s179
    %s194 = sphi 0, %s180
    %s198 = sphi 0, %s198
    %s200 = sphi 0, %s198
    %s201 = sphi 0, %s200
    %s215 = sphi 0, %s201
    %s221 = sphi 0, %s223
    %s224 = sphi 0, %s221
    %s225 = sphi 0, %s224
    %s241 = sphi 0, %s225
  $region4: #{one_conv_forward.1} parent=0 // loop_header_branch
    %20 = sbr.rel (%p18) target = $region8
  $region5: #{one_conv_forward.1} parent=0 // loop_body
    %s22 = ssub.s32 %s17, 1
    %s23 = ssub.s32 %s17, 2
    %s24 = sadd.s32 %s17, 1
    %s26 = sadd.s32 %s25, 1
    %p29 = scmp.eq.s32.totalorder %s17, 1
    %p30 = scmp.ne.s32.totalorder %s25, %s27
    %p31 = scmp.eq.s32.totalorder %s17, 0
    %p32 = por %p30, %p31
    %p33 = scmp.ne.s32.totalorder %s25, %s27
    %p34 = scmp.eq.s32.totalorder %s22, 1
    %p35 = por %p33, %p34
    %p36 = scmp.ne.s32.totalorder %s27, %s28
    %p37 = scmp.eq.s32.totalorder %s22, 0
    %p38 = por %p36, %p37
    %p39 = scmp.ne.s32.totalorder %s27, %s28
    %p40 = scmp.eq.s32.totalorder %s23, 1
    %p41 = por %p39, %p40
    %p43 = scmp.ne.s32.totalorder %s28, %s42
    %p44 = scmp.eq.s32.totalorder %s23, 0
    %p45 = por %p43, %p44
    %s46 = ssub.s32 %s17, %s24
    %p47 = scmp.eq.s32.totalorder %s46, 0
    %s49 = sadd.s32 %s48, 1
    %s50 = scalar_select %p47, %s48, %s49
    %p53 = pneg %p47
    %p54 = scmp.eq.s32.totalorder %s17, 1
    %p55 = por %p53, %p54
    %p56 = scmp.ne.s32.totalorder %s48, %s51
    %p57 = scmp.eq.s32.totalorder %s17, 0
    %p58 = por %p56, %p57
    %p59 = scmp.ne.s32.totalorder %s48, %s51
    %p60 = scmp.eq.s32.totalorder %s22, 1
    %p61 = por %p59, %p60
    %p62 = scmp.ne.s32.totalorder %s51, %s52
    %p63 = scmp.eq.s32.totalorder %s22, 0
    %p64 = por %p62, %p63
    %p65 = scmp.ne.s32.totalorder %s51, %s52
    %p66 = scmp.eq.s32.totalorder %s23, 1
    %p67 = por %p65, %p66
    %p69 = scmp.ne.s32.totalorder %s52, %s68
    %p70 = scmp.eq.s32.totalorder %s23, 0
    %p71 = por %p69, %p70
    %s73 = sadd.s32 %s72, 1
    %p76 = scmp.eq.s32.totalorder %s17, 1
    %p77 = scmp.ne.s32.totalorder %s72, %s74
    %p78 = scmp.eq.s32.totalorder %s17, 0
    %p79 = por %p77, %p78
    %p80 = scmp.ne.s32.totalorder %s72, %s74
    %p81 = scmp.eq.s32.totalorder %s22, 1
    %p82 = por %p80, %p81
    %p83 = scmp.ne.s32.totalorder %s74, %s75
    %p84 = scmp.eq.s32.totalorder %s22, 0
    %p85 = por %p83, %p84
    %p86 = scmp.ne.s32.totalorder %s74, %s75
    %p87 = scmp.eq.s32.totalorder %s23, 1
    %p88 = por %p86, %p87
    %p90 = scmp.ne.s32.totalorder %s75, %s89
    %p91 = scmp.eq.s32.totalorder %s23, 0
    %p92 = por %p90, %p91
    %s94 = sadd.s32 %s93, 1
    %p97 = scmp.eq.s32.totalorder %s17, 1
    %p98 = scmp.ne.s32.totalorder %s93, %s95
    %p99 = scmp.eq.s32.totalorder %s17, 0
    %p100 = por %p98, %p99
    %p101 = scmp.ne.s32.totalorder %s93, %s95
    %p102 = scmp.eq.s32.totalorder %s22, 1
    %p103 = por %p101, %p102
    %p104 = scmp.ne.s32.totalorder %s95, %s96
    %p105 = scmp.eq.s32.totalorder %s22, 0
    %p106 = por %p104, %p105
    %p107 = scmp.ne.s32.totalorder %s95, %s96
    %p108 = scmp.eq.s32.totalorder %s23, 1
    %p109 = por %p107, %p108
    %p111 = scmp.ne.s32.totalorder %s96, %s110
    %p112 = scmp.eq.s32.totalorder %s23, 0
    %p113 = por %p111, %p112
    %s115 = sadd.s32 %s114, 1
    %p118 = scmp.eq.s32.totalorder %s17, 1
    %p119 = scmp.ne.s32.totalorder %s114, %s116
    %p120 = scmp.eq.s32.totalorder %s17, 0
    %p121 = por %p119, %p120
    %p122 = scmp.ne.s32.totalorder %s114, %s116
    %p123 = scmp.eq.s32.totalorder %s22, 1
    %p124 = por %p122, %p123
    %p125 = scmp.ne.s32.totalorder %s116, %s117
    %p126 = scmp.eq.s32.totalorder %s22, 0
    %p127 = por %p125, %p126
    %p128 = scmp.ne.s32.totalorder %s116, %s117
    %p129 = scmp.eq.s32.totalorder %s23, 1
    %p130 = por %p128, %p129
    %p132 = scmp.ne.s32.totalorder %s117, %s131
    %p133 = scmp.eq.s32.totalorder %s23, 0
    %p134 = por %p132, %p133
    %s136 = sadd.s32 %s135, 1
    %p139 = scmp.eq.s32.totalorder %s17, 1
    %p140 = scmp.ne.s32.totalorder %s135, %s137
    %p141 = scmp.eq.s32.totalorder %s17, 0
    %p142 = por %p140, %p141
    %p143 = scmp.ne.s32.totalorder %s135, %s137
    %p144 = scmp.eq.s32.totalorder %s22, 1
    %p145 = por %p143, %p144
    %p146 = scmp.ne.s32.totalorder %s137, %s138
    %p147 = scmp.eq.s32.totalorder %s22, 0
    %p148 = por %p146, %p147
    %p149 = scmp.ne.s32.totalorder %s137, %s138
    %p150 = scmp.eq.s32.totalorder %s23, 1
    %p151 = por %p149, %p150
    %p153 = scmp.ne.s32.totalorder %s138, %s152
    %p154 = scmp.eq.s32.totalorder %s23, 0
    %p155 = por %p153, %p154
    %s157 = sadd.s32 %s156, 1
    %p160 = scmp.eq.s32.totalorder %s17, 1
    %p161 = scmp.ne.s32.totalorder %s156, %s158
    %p162 = scmp.eq.s32.totalorder %s17, 0
    %p163 = por %p161, %p162
    %p164 = scmp.ne.s32.totalorder %s156, %s158
    %p165 = scmp.eq.s32.totalorder %s22, 1
    %p166 = por %p164, %p165
    %p167 = scmp.ne.s32.totalorder %s158, %s159
    %p168 = scmp.eq.s32.totalorder %s22, 0
    %p169 = por %p167, %p168
    %p170 = scmp.ne.s32.totalorder %s158, %s159
    %p171 = scmp.eq.s32.totalorder %s23, 1
    %p172 = por %p170, %p171
    %p174 = scmp.ne.s32.totalorder %s159, %s173
    %p175 = scmp.eq.s32.totalorder %s23, 0
    %p176 = por %p174, %p175
    %s178 = sadd.s32 %s177, 1
    %p181 = scmp.eq.s32.totalorder %s17, 1
    %p182 = scmp.ne.s32.totalorder %s177, %s179
    %p183 = scmp.eq.s32.totalorder %s17, 0
    %p184 = por %p182, %p183
    %p185 = scmp.ne.s32.totalorder %s177, %s179
    %p186 = scmp.eq.s32.totalorder %s22, 1
    %p187 = por %p185, %p186
    %p188 = scmp.ne.s32.totalorder %s179, %s180
    %p189 = scmp.eq.s32.totalorder %s22, 0
    %p190 = por %p188, %p189
    %p191 = scmp.ne.s32.totalorder %s179, %s180
    %p192 = scmp.eq.s32.totalorder %s23, 1
    %p193 = por %p191, %p192
    %p195 = scmp.ne.s32.totalorder %s180, %s194
    %p196 = scmp.eq.s32.totalorder %s23, 0
    %p197 = por %p195, %p196
    %s199 = sadd.s32 %s198, 1
    %p202 = scmp.eq.s32.totalorder %s17, 1
    %p203 = scmp.ne.s32.totalorder %s198, %s200
    %p204 = scmp.eq.s32.totalorder %s17, 0
    %p205 = por %p203, %p204
    %p206 = scmp.ne.s32.totalorder %s198, %s200
    %p207 = scmp.eq.s32.totalorder %s22, 1
    %p208 = por %p206, %p207
    %p209 = scmp.ne.s32.totalorder %s200, %s201
    %p210 = scmp.eq.s32.totalorder %s22, 0
    %p211 = por %p209, %p210
    %p212 = scmp.ne.s32.totalorder %s200, %s201
    %p213 = scmp.eq.s32.totalorder %s23, 1
    %p214 = por %p212, %p213
    %p216 = scmp.ne.s32.totalorder %s201, %s215
    %p217 = scmp.eq.s32.totalorder %s23, 0
    %p218 = por %p216, %p217
    %s219 = ssub.s32 %s17, %s24
    %p220 = scmp.eq.s32.totalorder %s219, 0
    %s222 = sadd.s32 %s221, 1
    %s223 = scalar_select %p220, %s221, %s222
    %p226 = pneg %p220
    %p227 = scmp.eq.s32.totalorder %s17, 1
    %p228 = por %p226, %p227
    %p229 = scmp.ne.s32.totalorder %s221, %s224
    %p230 = scmp.eq.s32.totalorder %s17, 0
    %p231 = por %p229, %p230
    %p232 = scmp.ne.s32.totalorder %s221, %s224
    %p233 = scmp.eq.s32.totalorder %s22, 1
    %p234 = por %p232, %p233
    %p235 = scmp.ne.s32.totalorder %s224, %s225
    %p236 = scmp.eq.s32.totalorder %s22, 0
    %p237 = por %p235, %p236
    %p238 = scmp.ne.s32.totalorder %s224, %s225
    %p239 = scmp.eq.s32.totalorder %s23, 1
    %p240 = por %p238, %p239
    %p242 = scmp.ne.s32.totalorder %s225, %s241
    %p243 = scmp.eq.s32.totalorder %s23, 0
    %p244 = por %p242, %p243
    %p245 = scmp.le.s32.totalorder 1, %s17
    %p246 = scmp.lt.s32.totalorder %s17, 3
    %p247 = pnand %p245, %p246
    %p248 = pneg %p247
    // Predicated region
    $region9: #{one_conv_forward.1} parent=5 // pred_check
      _
    $region10: #{one_conv_forward.1} parent=5 // pred_check_branch
      %250 = sbr.rel (%p247) target = $region12
    $region11: #{one_conv_forward.1} parent=5 // pred_region
      %s251 = ssub.s32 %s17, 1
      // Predicated region
      $region13: #{one_conv_forward.1} parent=11 // pred_check
        %p252 = pneg %p38
      $region14: #{one_conv_forward.1} parent=11 // pred_check_branch
        %254 = sbr.rel (%p252) target = $region16
      $region15: #{one_conv_forward.1} parent=11 // pred_region
        _
      $region16: #{one_conv_forward.1} parent=11 // pred_fallthru
        _
      // Predicated region
      $region17: #{one_conv_forward.1} parent=11 // pred_check
        %p255 = pneg %p85
      $region18: #{one_conv_forward.1} parent=11 // pred_check_branch
        %257 = sbr.rel (%p255) target = $region20
      $region19: #{one_conv_forward.1} parent=11 // pred_region
        _
      $region20: #{one_conv_forward.1} parent=11 // pred_fallthru
        _
      // Predicated region
      $region21: #{one_conv_forward.1} parent=11 // pred_check
        %p258 = pneg %p106
      $region22: #{one_conv_forward.1} parent=11 // pred_check_branch
        %260 = sbr.rel (%p258) target = $region24
      $region23: #{one_conv_forward.1} parent=11 // pred_region
        _
      $region24: #{one_conv_forward.1} parent=11 // pred_fallthru
        _
      // Predicated region
      $region25: #{one_conv_forward.1} parent=11 // pred_check
        %p261 = pneg %p127
      $region26: #{one_conv_forward.1} parent=11 // pred_check_branch
        %263 = sbr.rel (%p261) target = $region28
      $region27: #{one_conv_forward.1} parent=11 // pred_region
        _
      $region28: #{one_conv_forward.1} parent=11 // pred_fallthru
        _
      // Predicated region
      $region29: #{one_conv_forward.1} parent=11 // pred_check
        %p264 = pneg %p148
      $region30: #{one_conv_forward.1} parent=11 // pred_check_branch
        %266 = sbr.rel (%p264) target = $region32
      $region31: #{one_conv_forward.1} parent=11 // pred_region
        _
      $region32: #{one_conv_forward.1} parent=11 // pred_fallthru
        _
      // Predicated region
      $region33: #{one_conv_forward.1} parent=11 // pred_check
        %p267 = pneg %p169
      $region34: #{one_conv_forward.1} parent=11 // pred_check_branch
        %269 = sbr.rel (%p267) target = $region36
      $region35: #{one_conv_forward.1} parent=11 // pred_region
        _
      $region36: #{one_conv_forward.1} parent=11 // pred_fallthru
        _
      // Predicated region
      $region37: #{one_conv_forward.1} parent=11 // pred_check
        %p270 = pneg %p190
      $region38: #{one_conv_forward.1} parent=11 // pred_check_branch
        %272 = sbr.rel (%p270) target = $region40
      $region39: #{one_conv_forward.1} parent=11 // pred_region
        _
      $region40: #{one_conv_forward.1} parent=11 // pred_fallthru
        _
      // Predicated region
      $region41: #{one_conv_forward.1} parent=11 // pred_check
        %p273 = pneg %p211
      $region42: #{one_conv_forward.1} parent=11 // pred_check_branch
        %275 = sbr.rel (%p273) target = $region44
      $region43: #{one_conv_forward.1} parent=11 // pred_region
        _
      $region44: #{one_conv_forward.1} parent=11 // pred_fallthru
        _
    $region12: #{one_conv_forward.1} parent=5 // pred_fallthru
      _
    %p276 = scmp.lt.s32.totalorder %s17, 2
    // Predicated region
    $region45: #{one_conv_forward.1} parent=5 // pred_check
      %p277 = pneg %p276
    $region46: #{one_conv_forward.1} parent=5 // pred_check_branch
      %279 = sbr.rel (%p277) target = $region48
    $region47: #{one_conv_forward.1} parent=5 // pred_region
      // Predicated region
      $region49: #{one_conv_forward.1} parent=47 // pred_check
        %p280 = pneg %p58
      $region50: #{one_conv_forward.1} parent=47 // pred_check_branch
        %282 = sbr.rel (%p280) target = $region52
      $region51: #{one_conv_forward.1} parent=47 // pred_region
        %s283 = smul.u32 2, %s17
        %p284 = scmp.lt.s32.totalorder %s283, 3
        %s285 = scalar_select %p284, %s283, 3
        %s286 = smul.addr %s285, 8
        %s287 = scalar_lea.vmem %s1, %s286
        %s288 = smul.u32 2, %s17
      $region52: #{one_conv_forward.1} parent=47 // pred_fallthru
        _
    $region48: #{one_conv_forward.1} parent=5 // pred_fallthru
      _
    %p289 = scmp.le.s32.totalorder 1, %s17
    %p290 = scmp.lt.s32.totalorder %s17, 3
    %p291 = pnand %p289, %p290
    %p292 = pneg %p291
    // Predicated region
    $region53: #{one_conv_forward.1} parent=5 // pred_check
      _
    $region54: #{one_conv_forward.1} parent=5 // pred_check_branch
      %294 = sbr.rel (%p291) target = $region56
    $region55: #{one_conv_forward.1} parent=5 // pred_region
      %s295 = ssub.s32 %s17, 1
      %p296 = pneg %p38
      %p297 = pneg %p35
      %s298 = smul.u32 2, %s22
      %p299 = scmp.lt.s32.totalorder %s298, 3
      %s300 = scalar_select %p299, %s298, 3
      %s301 = smul.addr %s300, 8
      %s302 = scalar_lea.vmem %s1, %s301
      %p303 = pneg %p64
      %p304 = pneg %p61
      %p305 = pneg %p85
      %p306 = pneg %p82
      %p307 = pneg %p106
      %p308 = pneg %p103
      %p309 = pneg %p127
      %p310 = pneg %p124
      %p311 = pneg %p148
      %p312 = pneg %p145
      %p313 = pneg %p169
      %p314 = pneg %p166
      %p315 = pneg %p190
      %p316 = pneg %p187
      %p317 = pneg %p211
      %p318 = pneg %p208
      %p319 = pneg %p237
      %p320 = pneg %p234
      %s321 = smul.u32 2, %s22
      %p322 = scmp.lt.s32.totalorder %s321, 3
      %s323 = scalar_select %p322, %s321, 3
      %s324 = smul.addr %s323, 4
      %s325 = scalar_lea.vmem %s9, %s324
      %s326 = smul.u32 2, %s22
      %p327 = scmp.lt.s32.totalorder %s326, 3
      %s328 = scalar_select %p327, %s326, 3
      %s329 = smul.addr %s328, 8
      %s330 = scalar_lea.vmem %s1, %s329
      %s331 = smul.u32 2, %s22
      %s332 = smul.u32 2, %s22
      %p333 = scmp.lt.s32.totalorder %s332, 3
      %s334 = scalar_select %p333, %s332, 3
      %s335 = smul.addr %s334, 4
      %s336 = scalar_lea.vmem %s9, %s335
      %s337 = smul.u32 2, %s22
      %v338 = vld [vmem:[%s330] sm:$0xff]
      %v339 = vld [vmem:[%s330 + $0x8] sm:$0xff]
      %340 = vrot.lane.b32.xlu0 %v338, 17
      %v341 = vpop.permute.xlu0 %340
      %342 = vrot.lane.b32.xlu0 %v339, 17
      %v343 = vpop.permute.xlu0 %342
      %v344 = vlaneseq
      %v345 = vand.u32 %v344, 127
      %vm346 = vcmp.lt.s32.totalorder %v345, 17
      %v347 = vsel %vm346, %v341, %v343
      %v348 = vsel %vm346, %v343, %v341
      %v349 = vld [vmem:[%s0] ss:$8 sm:$0x3]
      %v351 = vlaneseq
      %v352 = vshrl.u32 %v351, 7
      %v353 = vsub.s32 0, %v352
      %v354 = vrot.slane %v349, %v353
      %v355 = vlaneseq
      %v356 = vshrl.u32 %v355, 7
      %v357 = vsub.s32 1, %v356
      %v358 = vrot.slane %v349, %v357
      %v361 = vmul.f32 %v348, %v354
      %v362 = vmul.f32 %v347, %v358
      %363 = vst [vmem:[#allocation2] sm:$0xff] %v361
      %364 = vst [vmem:[#allocation2 + $0x8] sm:$0xff] %v362
      %365 = vrot.lane.b32.xlu0 %v338, 16
      %v366 = vpop.permute.xlu0 %365
      %367 = vrot.lane.b32.xlu0 %v339, 16
      %v368 = vpop.permute.xlu0 %367
      %vm369 = vcmp.lt.s32.totalorder %v345, 16
      %v370 = vsel %vm369, %v366, %v368
      %v371 = vsel %vm369, %v368, %v366
      %s372 = scalar_lea.vmem %s0, 1
      %v373 = vld [vmem:[%s372] ss:$8 sm:$0x3]
      %v375 = vlaneseq
      %v376 = vshrl.u32 %v375, 7
      %v377 = vsub.s32 0, %v376
      %v378 = vrot.slane %v373, %v377
      %v379 = vlaneseq
      %v380 = vshrl.u32 %v379, 7
      %v381 = vsub.s32 1, %v380
      %v382 = vrot.slane %v373, %v381
      %v385 = vmul.f32 %v371, %v378
      %v386 = vmul.f32 %v370, %v382
      %387 = vst [vmem:[#allocation2 + $0x10] sm:$0xff] %v385
      %388 = vst [vmem:[#allocation2 + $0x18] sm:$0xff] %v386
      %389 = vrot.lane.b32.xlu0 %v338, 15
      %v390 = vpop.permute.xlu0 %389
      %391 = vrot.lane.b32.xlu0 %v339, 15
      %v392 = vpop.permute.xlu0 %391
      %vm393 = vcmp.lt.s32.totalorder %v345, 15
      %v394 = vsel %vm393, %v390, %v392
      %v395 = vsel %vm393, %v392, %v390
      %s396 = scalar_lea.vmem %s0, 2
      %v397 = vld [vmem:[%s396] ss:$8 sm:$0x3]
      %v399 = vlaneseq
      %v400 = vshrl.u32 %v399, 7
      %v401 = vsub.s32 0, %v400
      %v402 = vrot.slane %v397, %v401
      %v403 = vlaneseq
      %v404 = vshrl.u32 %v403, 7
      %v405 = vsub.s32 1, %v404
      %v406 = vrot.slane %v397, %v405
      %v409 = vmul.f32 %v395, %v402
      %v410 = vmul.f32 %v394, %v406
      %411 = vst [vmem:[#allocation2 + $0x20] sm:$0xff] %v409
      %412 = vst [vmem:[#allocation2 + $0x28] sm:$0xff] %v410
      %413 = vrot.lane.b32.xlu0 %v338, 1
      %v414 = vpop.permute.xlu0 %413
      %415 = vrot.lane.b32.xlu0 %v339, 1
      %v416 = vpop.permute.xlu0 %415
      %vm417 = vcmp.lt.s32.totalorder %v345, 1
      %v418 = vsel %vm417, %v414, %v416
      %v419 = vsel %vm417, %v416, %v414
      %s420 = scalar_lea.vmem %s0, 3
      %v421 = vld [vmem:[%s420] ss:$8 sm:$0x3]
      %v423 = vlaneseq
      %v424 = vshrl.u32 %v423, 7
      %v425 = vsub.s32 0, %v424
      %v426 = vrot.slane %v421, %v425
      %v427 = vlaneseq
      %v428 = vshrl.u32 %v427, 7
      %v429 = vsub.s32 1, %v428
      %v430 = vrot.slane %v421, %v429
      %v433 = vmul.f32 %v419, %v426
      %v434 = vmul.f32 %v418, %v430
      %435 = vst [vmem:[#allocation2 + $0x30] sm:$0xff] %v433
      %436 = vst [vmem:[#allocation2 + $0x38] sm:$0xff] %v434
      %437 = vst [vmem:[#allocation2 + $0x40] sm:$0xff] %v338
      %438 = vst [vmem:[#allocation2 + $0x48] sm:$0xff] %v339
      %439 = vrot.lane.b32.xlu0 %v338, 127
      %v440 = vpop.permute.xlu0 %439
      %441 = vrot.lane.b32.xlu0 %v339, 127
      %v442 = vpop.permute.xlu0 %441
      %vm443 = vcmp.lt.s32.totalorder %v345, 127
      %v444 = vsel %vm443, %v440, %v442
      %v445 = vsel %vm443, %v442, %v440
      %s446 = scalar_lea.vmem %s0, 5
      %v447 = vld [vmem:[%s446] ss:$8 sm:$0x3]
      %v449 = vlaneseq
      %v450 = vshrl.u32 %v449, 7
      %v451 = vsub.s32 0, %v450
      %v452 = vrot.slane %v447, %v451
      %v453 = vlaneseq
      %v454 = vshrl.u32 %v453, 7
      %v455 = vsub.s32 1, %v454
      %v456 = vrot.slane %v447, %v455
      %v459 = vmul.f32 %v444, %v452
      %v460 = vmul.f32 %v445, %v456
      %461 = vst [vmem:[#allocation2 + $0x50] sm:$0xff] %v459
      %462 = vst [vmem:[#allocation2 + $0x58] sm:$0xff] %v460
      %463 = vrot.lane.b32.xlu0 %v338, 113
      %v464 = vpop.permute.xlu0 %463
      %465 = vrot.lane.b32.xlu0 %v339, 113
      %v466 = vpop.permute.xlu0 %465
      %vm467 = vcmp.lt.s32.totalorder %v345, 113
      %v468 = vsel %vm467, %v464, %v466
      %v469 = vsel %vm467, %v466, %v464
      %s470 = scalar_lea.vmem %s0, 6
      %v471 = vld [vmem:[%s470] ss:$8 sm:$0x3]
      %v473 = vlaneseq
      %v474 = vshrl.u32 %v473, 7
      %v475 = vsub.s32 0, %v474
      %v476 = vrot.slane %v471, %v475
      %v477 = vlaneseq
      %v478 = vshrl.u32 %v477, 7
      %v479 = vsub.s32 1, %v478
      %v480 = vrot.slane %v471, %v479
      %v483 = vmul.f32 %v468, %v476
      %v484 = vmul.f32 %v469, %v480
      %485 = vst [vmem:[#allocation2 + $0x60] sm:$0xff] %v483
      %486 = vst [vmem:[#allocation2 + $0x68] sm:$0xff] %v484
      %487 = vrot.lane.b32.xlu0 %v338, 112
      %v488 = vpop.permute.xlu0 %487
      %489 = vrot.lane.b32.xlu0 %v339, 112
      %v490 = vpop.permute.xlu0 %489
      %vm491 = vcmp.lt.s32.totalorder %v345, 112
      %v492 = vsel %vm491, %v488, %v490
      %v493 = vsel %vm491, %v490, %v488
      %s494 = scalar_lea.vmem %s0, 7
      %v495 = vld [vmem:[%s494] ss:$8 sm:$0x3]
      %v497 = vlaneseq
      %v498 = vshrl.u32 %v497, 7
      %v499 = vsub.s32 0, %v498
      %v500 = vrot.slane %v495, %v499
      %v501 = vlaneseq
      %v502 = vshrl.u32 %v501, 7
      %v503 = vsub.s32 1, %v502
      %v504 = vrot.slane %v495, %v503
      %v507 = vmul.f32 %v492, %v500
      %v508 = vmul.f32 %v493, %v504
      %509 = vst [vmem:[#allocation2 + $0x70] sm:$0xff] %v507
      %510 = vst [vmem:[#allocation2 + $0x78] sm:$0xff] %v508
      %511 = vrot.lane.b32.xlu0 %v338, 111
      %v512 = vpop.permute.xlu0 %511
      %513 = vrot.lane.b32.xlu0 %v339, 111
      %v514 = vpop.permute.xlu0 %513
      %vm515 = vcmp.lt.s32.totalorder %v345, 111
      %v516 = vsel %vm515, %v512, %v514
      %v517 = vsel %vm515, %v514, %v512
      %s518 = scalar_lea.vmem %s0, 16
      %v519 = vld [vmem:[%s518] ss:$8 sm:$0x3]
      %v521 = vlaneseq
      %v522 = vshrl.u32 %v521, 7
      %v523 = vsub.s32 0, %v522
      %v524 = vrot.slane %v519, %v523
      %v525 = vlaneseq
      %v526 = vshrl.u32 %v525, 7
      %v527 = vsub.s32 1, %v526
      %v528 = vrot.slane %v519, %v527
      %v531 = vmul.f32 %v516, %v524
      %v532 = vmul.f32 %v517, %v528
      %533 = vst [vmem:[#allocation2 + $0x80] sm:$0xff] %v531
      %534 = vst [vmem:[#allocation2 + $0x88] sm:$0xff] %v532
      %v535 = vld [vmem:[%s2] sm:$0xff]
      %v536 = vld [vmem:[#allocation2] sm:$0xff]
      %v537 = vld [vmem:[#allocation2 + $0x8] sm:$0xff]
      %v538 = vld [vmem:[#allocation2 + $0x10] sm:$0xff]
      %v539 = vld [vmem:[#allocation2 + $0x18] sm:$0xff]
      %v540 = vld [vmem:[#allocation2 + $0x20] sm:$0xff]
      %v541 = vld [vmem:[#allocation2 + $0x28] sm:$0xff]
      %v542 = vld [vmem:[#allocation2 + $0x30] sm:$0xff]
      %v543 = vld [vmem:[#allocation2 + $0x38] sm:$0xff]
      %v544 = vld [vmem:[#allocation2 + $0x40] sm:$0xff]
      %v545 = vld [vmem:[#allocation2 + $0x48] sm:$0xff]
      %v546 = vld [vmem:[#allocation2 + $0x50] sm:$0xff]
      %v547 = vld [vmem:[#allocation2 + $0x58] sm:$0xff]
      %v548 = vld [vmem:[#allocation2 + $0x60] sm:$0xff]
      %v549 = vld [vmem:[#allocation2 + $0x68] sm:$0xff]
      %v550 = vld [vmem:[#allocation2 + $0x70] sm:$0xff]
      %v551 = vld [vmem:[#allocation2 + $0x78] sm:$0xff]
      %v552 = vld [vmem:[#allocation2 + $0x80] sm:$0xff]
      %v553 = vld [vmem:[#allocation2 + $0x88] sm:$0xff]
      %v554 = vld [vmem:[%s3] sm:$0xff]
      %556 = vset.pattern.permute.xlu0 0
      %557 = vperm.xlu0 %556, %v554
      %v558 = vpop.permute.xlu0 %557
      %vm560 = vcmask 588800
      %v562 = vsel %vm560, %v535, 0
      %v564 = vand.u32 %v537, 4294901760
      %565 = vmatprep.subr.mxu0 %v564
      %v566 = vand.u32 %v536, 4294901760
      %567 = vmatpush1.msra.mxu0 %v566
      %v568 = vand.u32 %v539, 4294901760
      %569 = vmatprep.subr.mxu0 %v568
      %v570 = vand.u32 %v538, 4294901760
      %571 = vmatpush1.msra.mxu0 %v570
      %v572 = vand.u32 %v541, 4294901760
      %573 = vmatprep.subr.mxu0 %v572
      %v574 = vand.u32 %v540, 4294901760
      %575 = vmatpush1.msra.mxu0 %v574
      %v576 = vand.u32 %v543, 4294901760
      %577 = vmatprep.subr.mxu0 %v576
      %v578 = vand.u32 %v542, 4294901760
      %579 = vmatpush1.msra.mxu0 %v578
      %v580 = vand.u32 %v545, 4294901760
      %581 = vmatprep.subr.mxu0 %v580
      %v582 = vand.u32 %v544, 4294901760
      %583 = vmatpush1.msra.mxu0 %v582
      %v584 = vand.u32 %v547, 4294901760
      %585 = vmatprep.subr.mxu0 %v584
      %v586 = vand.u32 %v546, 4294901760
      %587 = vmatpush1.msra.mxu0 %v586
      %v588 = vand.u32 %v549, 4294901760
      %589 = vmatprep.subr.mxu0 %v588
      %v590 = vand.u32 %v548, 4294901760
      %591 = vmatpush1.msra.mxu0 %v590
      %v592 = vand.u32 %v551, 4294901760
      %593 = vmatprep.subr.mxu0 %v592
      %v594 = vand.u32 %v550, 4294901760
      %595 = vmatpush1.msra.mxu0 %v594
      %v596 = vand.u32 %v553, 4294901760
      %597 = vmatprep.subr.mxu0 %v596
      %v598 = vand.u32 %v552, 4294901760
      %599 = vmatpush1.msra.mxu0 %v598
      %600 = vmatprep.subr.mxu0 0.0
      %601 = vmatpush1.msra.mxu0 0.0
      %602 = vmatprep.subr.mxu0 0.0
      %603 = vmatpush1.msra.mxu0 0.0
      %604 = vmatprep.subr.mxu0 0.0
      %605 = vmatpush1.msra.mxu0 0.0
      %606 = vmatprep.subr.mxu0 0.0
      %607 = vmatpush1.msra.mxu0 0.0
      %608 = vmatprep.subr.mxu0 0.0
      %609 = vmatpush1.msra.mxu0 0.0
      %610 = vmatprep.subr.mxu0 0.0
      %611 = vmatpush1.msra.mxu0 0.0
      %612 = vmatprep.subr.mxu0 0.0
      %613 = vmatpush1.msra.mxu0 0.0
      %614 = vmatprep.subr.mxu0 0.0
      %615 = vmatpush1.msra.mxu0 0.0
      %616 = vmatprep.subr.mxu0 0.0
      %617 = vmatpush1.msra.mxu0 0.0
      %618 = vmatprep.subr.mxu0 0.0
      %619 = vmatpush1.msra.mxu0 0.0
      %620 = vmatprep.subr.mxu0 0.0
      %621 = vmatpush1.msra.mxu0 0.0
      %622 = vmatprep.subr.mxu0 0.0
      %623 = vmatpush1.msra.mxu0 0.0
      %624 = vmatprep.subr.mxu0 0.0
      %625 = vmatpush1.msra.mxu0 0.0
      %626 = vmatprep.subr.mxu0 0.0
      %627 = vmatpush1.msra.mxu0 0.0
      %628 = vmatprep.subr.mxu0 0.0
      %629 = vmatpush1.msra.mxu0 0.0
      %630 = vmatprep.subr.mxu0 0.0
      %631 = vmatpush1.msra.mxu0 0.0
      %632 = vmatprep.subr.mxu0 0.0
      %633 = vmatpush1.msra.mxu0 0.0
      %634 = vmatprep.subr.mxu0 0.0
      %635 = vmatpush1.msra.mxu0 0.0
      %636 = vmatprep.subr.mxu0 0.0
      %637 = vmatpush1.msra.mxu0 0.0
      %638 = vmatprep.subr.mxu0 0.0
      %639 = vmatpush1.msra.mxu0 0.0
      %640 = vmatprep.subr.mxu0 0.0
      %641 = vmatpush1.msra.mxu0 0.0
      %642 = vmatprep.subr.mxu0 0.0
      %643 = vmatpush1.msra.mxu0 0.0
      %644 = vmatprep.subr.mxu0 0.0
      %645 = vmatpush1.msra.mxu0 0.0
      %646 = vmatprep.mubr.f32.mxu0 0.0
      %v647 = vand.u32 %v562, 4294901760
      %v648 = vsub.f32 %v562, %v647
      %v649 = vand.u32 %v648, 4294901760
      %v650 = vsub.f32 %v648, %v649
      %v651 = vand.u32 %v650, 4294901760
      %652 = vmatmul.mubr.f32.gmra.mrb[0].mxu0 %v651
      %v653 = vpop.f32.mrb[0].mxu0
      %v654 = vadd.f32 %v558, %v653
      %v655 = vpop.f32.mrb[0].mxu0
      %v656 = vadd.f32 %v558, %v655
      %657 = vdwg.mxu0
      %v658 = vand.u32 %v537, 4294901760
      %v659 = vsub.f32 %v537, %v658
      %v660 = vand.u32 %v659, 4294901760
      %v661 = vsub.f32 %v659, %v660
      %v662 = vand.u32 %v661, 4294901760
      %663 = vmatprep.subr.mxu0 %v662
      %v664 = vand.u32 %v536, 4294901760
      %v665 = vsub.f32 %v536, %v664
      %v666 = vand.u32 %v665, 4294901760
      %v667 = vsub.f32 %v665, %v666
      %v668 = vand.u32 %v667, 4294901760
      %669 = vmatpush1.msra.mxu0 %v668
      %v670 = vand.u32 %v539, 4294901760
      %v671 = vsub.f32 %v539, %v670
      %v672 = vand.u32 %v671, 4294901760
      %v673 = vsub.f32 %v671, %v672
      %v674 = vand.u32 %v673, 4294901760
      %675 = vmatprep.subr.mxu0 %v674
      %v676 = vand.u32 %v538, 4294901760
      %v677 = vsub.f32 %v538, %v676
      %v678 = vand.u32 %v677, 4294901760
      %v679 = vsub.f32 %v677, %v678
      %v680 = vand.u32 %v679, 4294901760
      %681 = vmatpush1.msra.mxu0 %v680
      %v682 = vand.u32 %v541, 4294901760
      %v683 = vsub.f32 %v541, %v682
      %v684 = vand.u32 %v683, 4294901760
      %v685 = vsub.f32 %v683, %v684
      %v686 = vand.u32 %v685, 4294901760
      %687 = vmatprep.subr.mxu0 %v686
      %v688 = vand.u32 %v540, 4294901760
      %v689 = vsub.f32 %v540, %v688
      %v690 = vand.u32 %v689, 4294901760
      %v691 = vsub.f32 %v689, %v690
      %v692 = vand.u32 %v691, 4294901760
      %693 = vmatpush1.msra.mxu0 %v692
      %v694 = vand.u32 %v543, 4294901760
      %v695 = vsub.f32 %v543, %v694
      %v696 = vand.u32 %v695, 4294901760
      %v697 = vsub.f32 %v695, %v696
      %v698 = vand.u32 %v697, 4294901760
      %699 = vmatprep.subr.mxu0 %v698
      %v700 = vand.u32 %v542, 4294901760
      %v701 = vsub.f32 %v542, %v700
      %v702 = vand.u32 %v701, 4294901760
      %v703 = vsub.f32 %v701, %v702
      %v704 = vand.u32 %v703, 4294901760
      %705 = vmatpush1.msra.mxu0 %v704
      %v706 = vand.u32 %v545, 4294901760
      %v707 = vsub.f32 %v545, %v706
      %v708 = vand.u32 %v707, 4294901760
      %v709 = vsub.f32 %v707, %v708
      %v710 = vand.u32 %v709, 4294901760
      %711 = vmatprep.subr.mxu0 %v710
      %v712 = vand.u32 %v544, 4294901760
      %v713 = vsub.f32 %v544, %v712
      %v714 = vand.u32 %v713, 4294901760
      %v715 = vsub.f32 %v713, %v714
      %v716 = vand.u32 %v715, 4294901760
      %717 = vmatpush1.msra.mxu0 %v716
      %v718 = vand.u32 %v547, 4294901760
      %v719 = vsub.f32 %v547, %v718
      %v720 = vand.u32 %v719, 4294901760
      %v721 = vsub.f32 %v719, %v720
      %v722 = vand.u32 %v721, 4294901760
      %723 = vmatprep.subr.mxu0 %v722
      %v724 = vand.u32 %v546, 4294901760
      %v725 = vsub.f32 %v546, %v724
      %v726 = vand.u32 %v725, 4294901760
      %v727 = vsub.f32 %v725, %v726
      %v728 = vand.u32 %v727, 4294901760
      %729 = vmatpush1.msra.mxu0 %v728
      %v730 = vand.u32 %v549, 4294901760
      %v731 = vsub.f32 %v549, %v730
      %v732 = vand.u32 %v731, 4294901760
      %v733 = vsub.f32 %v731, %v732
      %v734 = vand.u32 %v733, 4294901760
      %735 = vmatprep.subr.mxu0 %v734
      %v736 = vand.u32 %v548, 4294901760
      %v737 = vsub.f32 %v548, %v736
      %v738 = vand.u32 %v737, 4294901760
      %v739 = vsub.f32 %v737, %v738
      %v740 = vand.u32 %v739, 4294901760
      %741 = vmatpush1.msra.mxu0 %v740
      %v742 = vand.u32 %v551, 4294901760
      %v743 = vsub.f32 %v551, %v742
      %v744 = vand.u32 %v743, 4294901760
      %v745 = vsub.f32 %v743, %v744
      %v746 = vand.u32 %v745, 4294901760
      %747 = vmatprep.subr.mxu0 %v746
      %v748 = vand.u32 %v550, 4294901760
      %v749 = vsub.f32 %v550, %v748
      %v750 = vand.u32 %v749, 4294901760
      %v751 = vsub.f32 %v749, %v750
      %v752 = vand.u32 %v751, 4294901760
      %753 = vmatpush1.msra.mxu0 %v752
      %v754 = vand.u32 %v553, 4294901760
      %v755 = vsub.f32 %v553, %v754
      %v756 = vand.u32 %v755, 4294901760
      %v757 = vsub.f32 %v755, %v756
      %v758 = vand.u32 %v757, 4294901760
      %759 = vmatprep.subr.mxu0 %v758
      %v760 = vand.u32 %v552, 4294901760
      %v761 = vsub.f32 %v552, %v760
      %v762 = vand.u32 %v761, 4294901760
      %v763 = vsub.f32 %v761, %v762
      %v764 = vand.u32 %v763, 4294901760
      %765 = vmatpush1.msra.mxu0 %v764
      %766 = vmatprep.subr.mxu0 0.0
      %767 = vmatpush1.msra.mxu0 0.0
      %768 = vmatprep.subr.mxu0 0.0
      %769 = vmatpush1.msra.mxu0 0.0
      %770 = vmatprep.subr.mxu0 0.0
      %771 = vmatpush1.msra.mxu0 0.0
      %772 = vmatprep.subr.mxu0 0.0
      %773 = vmatpush1.msra.mxu0 0.0
      %774 = vmatprep.subr.mxu0 0.0
      %775 = vmatpush1.msra.mxu0 0.0
      %776 = vmatprep.subr.mxu0 0.0
      %777 = vmatpush1.msra.mxu0 0.0
      %778 = vmatprep.subr.mxu0 0.0
      %779 = vmatpush1.msra.mxu0 0.0
      %780 = vmatprep.subr.mxu0 0.0
      %781 = vmatpush1.msra.mxu0 0.0
      %782 = vmatprep.subr.mxu0 0.0
      %783 = vmatpush1.msra.mxu0 0.0
      %784 = vmatprep.subr.mxu0 0.0
      %785 = vmatpush1.msra.mxu0 0.0
      %786 = vmatprep.subr.mxu0 0.0
      %787 = vmatpush1.msra.mxu0 0.0
      %788 = vmatprep.subr.mxu0 0.0
      %789 = vmatpush1.msra.mxu0 0.0
      %790 = vmatprep.subr.mxu0 0.0
      %791 = vmatpush1.msra.mxu0 0.0
      %792 = vmatprep.subr.mxu0 0.0
      %793 = vmatpush1.msra.mxu0 0.0
      %794 = vmatprep.subr.mxu0 0.0
      %795 = vmatpush1.msra.mxu0 0.0
      %796 = vmatprep.subr.mxu0 0.0
      %797 = vmatpush1.msra.mxu0 0.0
      %798 = vmatprep.subr.mxu0 0.0
      %799 = vmatpush1.msra.mxu0 0.0
      %800 = vmatprep.subr.mxu0 0.0
      %801 = vmatpush1.msra.mxu0 0.0
      %802 = vmatprep.subr.mxu0 0.0
      %803 = vmatpush1.msra.mxu0 0.0
      %804 = vmatprep.subr.mxu0 0.0
      %805 = vmatpush1.msra.mxu0 0.0
      %806 = vmatprep.subr.mxu0 0.0
      %807 = vmatpush1.msra.mxu0 0.0
      %808 = vmatprep.subr.mxu0 0.0
      %809 = vmatpush1.msra.mxu0 0.0
      %810 = vmatprep.subr.mxu0 0.0
      %811 = vmatpush1.msra.mxu0 0.0
      %812 = vmatprep.mubr.f32.mxu0 0.0
      %v813 = vand.u32 %v562, 4294901760
      %814 = vmatmul.mubr.f32.gmra.mrb[0].mxu0 %v813
      %v815 = vpop.f32.mrb[0].mxu0
      %v816 = vadd.f32 %v654, %v815
      %v817 = vpop.f32.mrb[0].mxu0
      %v818 = vadd.f32 %v656, %v817
      %819 = vdwg.mxu0
      %v820 = vand.u32 %v537, 4294901760
      %v821 = vsub.f32 %v537, %v820
      %822 = vmatprep.subr.mxu0 %v821
      %v823 = vand.u32 %v536, 4294901760
      %v824 = vsub.f32 %v536, %v823
      %825 = vmatpush1.msra.mxu0 %v824
      %v826 = vand.u32 %v539, 4294901760
      %v827 = vsub.f32 %v539, %v826
      %828 = vmatprep.subr.mxu0 %v827
      %v829 = vand.u32 %v538, 4294901760
      %v830 = vsub.f32 %v538, %v829
      %831 = vmatpush1.msra.mxu0 %v830
      %v832 = vand.u32 %v541, 4294901760
      %v833 = vsub.f32 %v541, %v832
      %834 = vmatprep.subr.mxu0 %v833
      %v835 = vand.u32 %v540, 4294901760
      %v836 = vsub.f32 %v540, %v835
      %837 = vmatpush1.msra.mxu0 %v836
      %v838 = vand.u32 %v543, 4294901760
      %v839 = vsub.f32 %v543, %v838
      %840 = vmatprep.subr.mxu0 %v839
      %v841 = vand.u32 %v542, 4294901760
      %v842 = vsub.f32 %v542, %v841
      %843 = vmatpush1.msra.mxu0 %v842
      %v844 = vand.u32 %v545, 4294901760
      %v845 = vsub.f32 %v545, %v844
      %846 = vmatprep.subr.mxu0 %v845
      %v847 = vand.u32 %v544, 4294901760
      %v848 = vsub.f32 %v544, %v847
      %849 = vmatpush1.msra.mxu0 %v848
      %v850 = vand.u32 %v547, 4294901760
      %v851 = vsub.f32 %v547, %v850
      %852 = vmatprep.subr.mxu0 %v851
      %v853 = vand.u32 %v546, 4294901760
      %v854 = vsub.f32 %v546, %v853
      %855 = vmatpush1.msra.mxu0 %v854
      %v856 = vand.u32 %v549, 4294901760
      %v857 = vsub.f32 %v549, %v856
      %858 = vmatprep.subr.mxu0 %v857
      %v859 = vand.u32 %v548, 4294901760
      %v860 = vsub.f32 %v548, %v859
      %861 = vmatpush1.msra.mxu0 %v860
      %v862 = vand.u32 %v551, 4294901760
      %v863 = vsub.f32 %v551, %v862
      %864 = vmatprep.subr.mxu0 %v863
      %v865 = vand.u32 %v550, 4294901760
      %v866 = vsub.f32 %v550, %v865
      %867 = vmatpush1.msra.mxu0 %v866
      %v868 = vand.u32 %v553, 4294901760
      %v869 = vsub.f32 %v553, %v868
      %870 = vmatprep.subr.mxu0 %v869
      %v871 = vand.u32 %v552, 4294901760
      %v872 = vsub.f32 %v552, %v871
      %873 = vmatpush1.msra.mxu0 %v872
      %874 = vmatprep.subr.mxu0 0.0
      %875 = vmatpush1.msra.mxu0 0.0
      %876 = vmatprep.subr.mxu0 0.0
      %877 = vmatpush1.msra.mxu0 0.0
      %878 = vmatprep.subr.mxu0 0.0
      %879 = vmatpush1.msra.mxu0 0.0
      %880 = vmatprep.subr.mxu0 0.0
      %881 = vmatpush1.msra.mxu0 0.0
      %882 = vmatprep.subr.mxu0 0.0
      %883 = vmatpush1.msra.mxu0 0.0
      %884 = vmatprep.subr.mxu0 0.0
      %885 = vmatpush1.msra.mxu0 0.0
      %886 = vmatprep.subr.mxu0 0.0
      %887 = vmatpush1.msra.mxu0 0.0
      %888 = vmatprep.subr.mxu0 0.0
      %889 = vmatpush1.msra.mxu0 0.0
      %890 = vmatprep.subr.mxu0 0.0
      %891 = vmatpush1.msra.mxu0 0.0
      %892 = vmatprep.subr.mxu0 0.0
      %893 = vmatpush1.msra.mxu0 0.0
      %894 = vmatprep.subr.mxu0 0.0
      %895 = vmatpush1.msra.mxu0 0.0
      %896 = vmatprep.subr.mxu0 0.0
      %897 = vmatpush1.msra.mxu0 0.0
      %898 = vmatprep.subr.mxu0 0.0
      %899 = vmatpush1.msra.mxu0 0.0
      %900 = vmatprep.subr.mxu0 0.0
      %901 = vmatpush1.msra.mxu0 0.0
      %902 = vmatprep.subr.mxu0 0.0
      %903 = vmatpush1.msra.mxu0 0.0
      %904 = vmatprep.subr.mxu0 0.0
      %905 = vmatpush1.msra.mxu0 0.0
      %906 = vmatprep.subr.mxu0 0.0
      %907 = vmatpush1.msra.mxu0 0.0
      %908 = vmatprep.subr.mxu0 0.0
      %909 = vmatpush1.msra.mxu0 0.0
      %910 = vmatprep.subr.mxu0 0.0
      %911 = vmatpush1.msra.mxu0 0.0
      %912 = vmatprep.subr.mxu0 0.0
      %913 = vmatpush1.msra.mxu0 0.0
      %914 = vmatprep.subr.mxu0 0.0
      %915 = vmatpush1.msra.mxu0 0.0
      %916 = vmatprep.subr.mxu0 0.0
      %917 = vmatpush1.msra.mxu0 0.0
      %918 = vmatprep.subr.mxu0 0.0
      %919 = vmatpush1.msra.mxu0 0.0
      %920 = vmatprep.mubr.f32.mxu0 0.0
      %v921 = vand.u32 %v562, 4294901760
      %v922 = vsub.f32 %v562, %v921
      %923 = vmatmul.mubr.f32.gmra.mrb[0].mxu0 %v922
      %v924 = vpop.f32.mrb[0].mxu0
      %v925 = vadd.f32 %v816, %v924
      %v926 = vpop.f32.mrb[0].mxu0
      %v927 = vadd.f32 %v818, %v926
      %928 = vdwg.mxu0
      %v929 = vand.u32 %v537, 4294901760
      %930 = vmatprep.subr.mxu0 %v929
      %v931 = vand.u32 %v536, 4294901760
      %932 = vmatpush1.msra.mxu0 %v931
      %v933 = vand.u32 %v539, 4294901760
      %934 = vmatprep.subr.mxu0 %v933
      %v935 = vand.u32 %v538, 4294901760
      %936 = vmatpush1.msra.mxu0 %v935
      %v937 = vand.u32 %v541, 4294901760
      %938 = vmatprep.subr.mxu0 %v937
      %v939 = vand.u32 %v540, 4294901760
      %940 = vmatpush1.msra.mxu0 %v939
      %v941 = vand.u32 %v543, 4294901760
      %942 = vmatprep.subr.mxu0 %v941
      %v943 = vand.u32 %v542, 4294901760
      %944 = vmatpush1.msra.mxu0 %v943
      %v945 = vand.u32 %v545, 4294901760
      %946 = vmatprep.subr.mxu0 %v945
      %v947 = vand.u32 %v544, 4294901760
      %948 = vmatpush1.msra.mxu0 %v947
      %v949 = vand.u32 %v547, 4294901760
      %950 = vmatprep.subr.mxu0 %v949
      %v951 = vand.u32 %v546, 4294901760
      %952 = vmatpush1.msra.mxu0 %v951
      %v953 = vand.u32 %v549, 4294901760
      %954 = vmatprep.subr.mxu0 %v953
      %v955 = vand.u32 %v548, 4294901760
      %956 = vmatpush1.msra.mxu0 %v955
      %v957 = vand.u32 %v551, 4294901760
      %958 = vmatprep.subr.mxu0 %v957
      %v959 = vand.u32 %v550, 4294901760
      %960 = vmatpush1.msra.mxu0 %v959
      %v961 = vand.u32 %v553, 4294901760
      %962 = vmatprep.subr.mxu0 %v961
      %v963 = vand.u32 %v552, 4294901760
      %964 = vmatpush1.msra.mxu0 %v963
      %965 = vmatprep.subr.mxu0 0.0
      %966 = vmatpush1.msra.mxu0 0.0
      %967 = vmatprep.subr.mxu0 0.0
      %968 = vmatpush1.msra.mxu0 0.0
      %969 = vmatprep.subr.mxu0 0.0
      %970 = vmatpush1.msra.mxu0 0.0
      %971 = vmatprep.subr.mxu0 0.0
      %972 = vmatpush1.msra.mxu0 0.0
      %973 = vmatprep.subr.mxu0 0.0
      %974 = vmatpush1.msra.mxu0 0.0
      %975 = vmatprep.subr.mxu0 0.0
      %976 = vmatpush1.msra.mxu0 0.0
      %977 = vmatprep.subr.mxu0 0.0
      %978 = vmatpush1.msra.mxu0 0.0
      %979 = vmatprep.subr.mxu0 0.0
      %980 = vmatpush1.msra.mxu0 0.0
      %981 = vmatprep.subr.mxu0 0.0
      %982 = vmatpush1.msra.mxu0 0.0
      %983 = vmatprep.subr.mxu0 0.0
      %984 = vmatpush1.msra.mxu0 0.0
      %985 = vmatprep.subr.mxu0 0.0
      %986 = vmatpush1.msra.mxu0 0.0
      %987 = vmatprep.subr.mxu0 0.0
      %988 = vmatpush1.msra.mxu0 0.0
      %989 = vmatprep.subr.mxu0 0.0
      %990 = vmatpush1.msra.mxu0 0.0
      %991 = vmatprep.subr.mxu0 0.0
      %992 = vmatpush1.msra.mxu0 0.0
      %993 = vmatprep.subr.mxu0 0.0
      %994 = vmatpush1.msra.mxu0 0.0
      %995 = vmatprep.subr.mxu0 0.0
      %996 = vmatpush1.msra.mxu0 0.0
      %997 = vmatprep.subr.mxu0 0.0
      %998 = vmatpush1.msra.mxu0 0.0
      %999 = vmatprep.subr.mxu0 0.0
      %1000 = vmatpush1.msra.mxu0 0.0
      %1001 = vmatprep.subr.mxu0 0.0
      %1002 = vmatpush1.msra.mxu0 0.0
      %1003 = vmatprep.subr.mxu0 0.0
      %1004 = vmatpush1.msra.mxu0 0.0
      %1005 = vmatprep.subr.mxu0 0.0
      %1006 = vmatpush1.msra.mxu0 0.0
      %1007 = vmatprep.subr.mxu0 0.0
      %1008 = vmatpush1.msra.mxu0 0.0
      %1009 = vmatprep.subr.mxu0 0.0
      %1010 = vmatpush1.msra.mxu0 0.0
      %1011 = vmatprep.mubr.f32.mxu0 0.0
      %v1012 = vand.u32 %v562, 4294901760
      %v1013 = vsub.f32 %v562, %v1012
      %v1014 = vand.u32 %v1013, 4294901760
      %1015 = vmatmul.mubr.f32.gmra.mrb[0].mxu0 %v1014
      %v1016 = vpop.f32.mrb[0].mxu0
      %v1017 = vadd.f32 %v925, %v1016
      %v1018 = vpop.f32.mrb[0].mxu0
      %v1019 = vadd.f32 %v927, %v1018
      %1020 = vdwg.mxu0
      %v1021 = vand.u32 %v537, 4294901760
      %v1022 = vsub.f32 %v537, %v1021
      %v1023 = vand.u32 %v1022, 4294901760
      %1024 = vmatprep.subr.mxu0 %v1023
      %v1025 = vand.u32 %v536, 4294901760
      %v1026 = vsub.f32 %v536, %v1025
      %v1027 = vand.u32 %v1026, 4294901760
      %1028 = vmatpush1.msra.mxu0 %v1027
      %v1029 = vand.u32 %v539, 4294901760
      %v1030 = vsub.f32 %v539, %v1029
      %v1031 = vand.u32 %v1030, 4294901760
      %1032 = vmatprep.subr.mxu0 %v1031
      %v1033 = vand.u32 %v538, 4294901760
      %v1034 = vsub.f32 %v538, %v1033
      %v1035 = vand.u32 %v1034, 4294901760
      %1036 = vmatpush1.msra.mxu0 %v1035
      %v1037 = vand.u32 %v541, 4294901760
      %v1038 = vsub.f32 %v541, %v1037
      %v1039 = vand.u32 %v1038, 4294901760
      %1040 = vmatprep.subr.mxu0 %v1039
      %v1041 = vand.u32 %v540, 4294901760
      %v1042 = vsub.f32 %v540, %v1041
      %v1043 = vand.u32 %v1042, 4294901760
      %1044 = vmatpush1.msra.mxu0 %v1043
      %v1045 = vand.u32 %v543, 4294901760
      %v1046 = vsub.f32 %v543, %v1045
      %v1047 = vand.u32 %v1046, 4294901760
      %1048 = vmatprep.subr.mxu0 %v1047
      %v1049 = vand.u32 %v542, 4294901760
      %v1050 = vsub.f32 %v542, %v1049
      %v1051 = vand.u32 %v1050, 4294901760
      %1052 = vmatpush1.msra.mxu0 %v1051
      %v1053 = vand.u32 %v545, 4294901760
      %v1054 = vsub.f32 %v545, %v1053
      %v1055 = vand.u32 %v1054, 4294901760
      %1056 = vmatprep.subr.mxu0 %v1055
      %v1057 = vand.u32 %v544, 4294901760
      %v1058 = vsub.f32 %v544, %v1057
      %v1059 = vand.u32 %v1058, 4294901760
      %1060 = vmatpush1.msra.mxu0 %v1059
      %v1061 = vand.u32 %v547, 4294901760
      %v1062 = vsub.f32 %v547, %v1061
      %v1063 = vand.u32 %v1062, 4294901760
      %1064 = vmatprep.subr.mxu0 %v1063
      %v1065 = vand.u32 %v546, 4294901760
      %v1066 = vsub.f32 %v546, %v1065
      %v1067 = vand.u32 %v1066, 4294901760
      %1068 = vmatpush1.msra.mxu0 %v1067
      %v1069 = vand.u32 %v549, 4294901760
      %v1070 = vsub.f32 %v549, %v1069
      %v1071 = vand.u32 %v1070, 4294901760
      %1072 = vmatprep.subr.mxu0 %v1071
      %v1073 = vand.u32 %v548, 4294901760
      %v1074 = vsub.f32 %v548, %v1073
      %v1075 = vand.u32 %v1074, 4294901760
      %1076 = vmatpush1.msra.mxu0 %v1075
      %v1077 = vand.u32 %v551, 4294901760
      %v1078 = vsub.f32 %v551, %v1077
      %v1079 = vand.u32 %v1078, 4294901760
      %1080 = vmatprep.subr.mxu0 %v1079
      %v1081 = vand.u32 %v550, 4294901760
      %v1082 = vsub.f32 %v550, %v1081
      %v1083 = vand.u32 %v1082, 4294901760
      %1084 = vmatpush1.msra.mxu0 %v1083
      %v1085 = vand.u32 %v553, 4294901760
      %v1086 = vsub.f32 %v553, %v1085
      %v1087 = vand.u32 %v1086, 4294901760
      %1088 = vmatprep.subr.mxu0 %v1087
      %v1089 = vand.u32 %v552, 4294901760
      %v1090 = vsub.f32 %v552, %v1089
      %v1091 = vand.u32 %v1090, 4294901760
      %1092 = vmatpush1.msra.mxu0 %v1091
      %1093 = vmatprep.subr.mxu0 0.0
      %1094 = vmatpush1.msra.mxu0 0.0
      %1095 = vmatprep.subr.mxu0 0.0
      %1096 = vmatpush1.msra.mxu0 0.0
      %1097 = vmatprep.subr.mxu0 0.0
      %1098 = vmatpush1.msra.mxu0 0.0
      %1099 = vmatprep.subr.mxu0 0.0
      %1100 = vmatpush1.msra.mxu0 0.0
      %1101 = vmatprep.subr.mxu0 0.0
      %1102 = vmatpush1.msra.mxu0 0.0
      %1103 = vmatprep.subr.mxu0 0.0
      %1104 = vmatpush1.msra.mxu0 0.0
      %1105 = vmatprep.subr.mxu0 0.0
      %1106 = vmatpush1.msra.mxu0 0.0
      %1107 = vmatprep.subr.mxu0 0.0
      %1108 = vmatpush1.msra.mxu0 0.0
      %1109 = vmatprep.subr.mxu0 0.0
      %1110 = vmatpush1.msra.mxu0 0.0
      %1111 = vmatprep.subr.mxu0 0.0
      %1112 = vmatpush1.msra.mxu0 0.0
      %1113 = vmatprep.subr.mxu0 0.0
      %1114 = vmatpush1.msra.mxu0 0.0
      %1115 = vmatprep.subr.mxu0 0.0
      %1116 = vmatpush1.msra.mxu0 0.0
      %1117 = vmatprep.subr.mxu0 0.0
      %1118 = vmatpush1.msra.mxu0 0.0
      %1119 = vmatprep.subr.mxu0 0.0
      %1120 = vmatpush1.msra.mxu0 0.0
      %1121 = vmatprep.subr.mxu0 0.0
      %1122 = vmatpush1.msra.mxu0 0.0
      %1123 = vmatprep.subr.mxu0 0.0
      %1124 = vmatpush1.msra.mxu0 0.0
      %1125 = vmatprep.subr.mxu0 0.0
      %1126 = vmatpush1.msra.mxu0 0.0
      %1127 = vmatprep.subr.mxu0 0.0
      %1128 = vmatpush1.msra.mxu0 0.0
      %1129 = vmatprep.subr.mxu0 0.0
      %1130 = vmatpush1.msra.mxu0 0.0
      %1131 = vmatprep.subr.mxu0 0.0
      %1132 = vmatpush1.msra.mxu0 0.0
      %1133 = vmatprep.subr.mxu0 0.0
      %1134 = vmatpush1.msra.mxu0 0.0
      %1135 = vmatprep.subr.mxu0 0.0
      %1136 = vmatpush1.msra.mxu0 0.0
      %1137 = vmatprep.subr.mxu0 0.0
      %1138 = vmatpush1.msra.mxu0 0.0
      %1139 = vmatprep.mubr.f32.mxu0 0.0
      %v1140 = vand.u32 %v562, 4294901760
      %1141 = vmatmul.mubr.f32.gmra.mrb[0].mxu0 %v1140
      %v1142 = vpop.f32.mrb[0].mxu0
      %v1143 = vadd.f32 %v1017, %v1142
      %v1144 = vpop.f32.mrb[0].mxu0
      %v1145 = vadd.f32 %v1019, %v1144
      %1146 = vdwg.mxu0
      %v1147 = vand.u32 %v537, 4294901760
      %1148 = vmatprep.subr.mxu0 %v1147
      %v1149 = vand.u32 %v536, 4294901760
      %1150 = vmatpush1.msra.mxu0 %v1149
      %v1151 = vand.u32 %v539, 4294901760
      %1152 = vmatprep.subr.mxu0 %v1151
      %v1153 = vand.u32 %v538, 4294901760
      %1154 = vmatpush1.msra.mxu0 %v1153
      %v1155 = vand.u32 %v541, 4294901760
      %1156 = vmatprep.subr.mxu0 %v1155
      %v1157 = vand.u32 %v540, 4294901760
      %1158 = vmatpush1.msra.mxu0 %v1157
      %v1159 = vand.u32 %v543, 4294901760
      %1160 = vmatprep.subr.mxu0 %v1159
      %v1161 = vand.u32 %v542, 4294901760
      %1162 = vmatpush1.msra.mxu0 %v1161
      %v1163 = vand.u32 %v545, 4294901760
      %1164 = vmatprep.subr.mxu0 %v1163
      %v1165 = vand.u32 %v544, 4294901760
      %1166 = vmatpush1.msra.mxu0 %v1165
      %v1167 = vand.u32 %v547, 4294901760
      %1168 = vmatprep.subr.mxu0 %v1167
      %v1169 = vand.u32 %v546, 4294901760
      %1170 = vmatpush1.msra.mxu0 %v1169
      %v1171 = vand.u32 %v549, 4294901760
      %1172 = vmatprep.subr.mxu0 %v1171
      %v1173 = vand.u32 %v548, 4294901760
      %1174 = vmatpush1.msra.mxu0 %v1173
      %v1175 = vand.u32 %v551, 4294901760
      %1176 = vmatprep.subr.mxu0 %v1175
      %v1177 = vand.u32 %v550, 4294901760
      %1178 = vmatpush1.msra.mxu0 %v1177
      %v1179 = vand.u32 %v553, 4294901760
      %1180 = vmatprep.subr.mxu0 %v1179
      %v1181 = vand.u32 %v552, 4294901760
      %1182 = vmatpush1.msra.mxu0 %v1181
      %1183 = vmatprep.subr.mxu0 0.0
      %1184 = vmatpush1.msra.mxu0 0.0
      %1185 = vmatprep.subr.mxu0 0.0
      %1186 = vmatpush1.msra.mxu0 0.0
      %1187 = vmatprep.subr.mxu0 0.0
      %1188 = vmatpush1.msra.mxu0 0.0
      %1189 = vmatprep.subr.mxu0 0.0
      %1190 = vmatpush1.msra.mxu0 0.0
      %1191 = vmatprep.subr.mxu0 0.0
      %1192 = vmatpush1.msra.mxu0 0.0
      %1193 = vmatprep.subr.mxu0 0.0
      %1194 = vmatpush1.msra.mxu0 0.0
      %1195 = vmatprep.subr.mxu0 0.0
      %1196 = vmatpush1.msra.mxu0 0.0
      %1197 = vmatprep.subr.mxu0 0.0
      %1198 = vmatpush1.msra.mxu0 0.0
      %1199 = vmatprep.subr.mxu0 0.0
      %1200 = vmatpush1.msra.mxu0 0.0
      %1201 = vmatprep.subr.mxu0 0.0
      %1202 = vmatpush1.msra.mxu0 0.0
      %1203 = vmatprep.subr.mxu0 0.0
      %1204 = vmatpush1.msra.mxu0 0.0
      %1205 = vmatprep.subr.mxu0 0.0
      %1206 = vmatpush1.msra.mxu0 0.0
      %1207 = vmatprep.subr.mxu0 0.0
      %1208 = vmatpush1.msra.mxu0 0.0
      %1209 = vmatprep.subr.mxu0 0.0
      %1210 = vmatpush1.msra.mxu0 0.0
      %1211 = vmatprep.subr.mxu0 0.0
      %1212 = vmatpush1.msra.mxu0 0.0
      %1213 = vmatprep.subr.mxu0 0.0
      %1214 = vmatpush1.msra.mxu0 0.0
      %1215 = vmatprep.subr.mxu0 0.0
      %1216 = vmatpush1.msra.mxu0 0.0
      %1217 = vmatprep.subr.mxu0 0.0
      %1218 = vmatpush1.msra.mxu0 0.0
      %1219 = vmatprep.subr.mxu0 0.0
      %1220 = vmatpush1.msra.mxu0 0.0
      %1221 = vmatprep.subr.mxu0 0.0
      %1222 = vmatpush1.msra.mxu0 0.0
      %1223 = vmatprep.subr.mxu0 0.0
      %1224 = vmatpush1.msra.mxu0 0.0
      %1225 = vmatprep.subr.mxu0 0.0
      %1226 = vmatpush1.msra.mxu0 0.0
      %1227 = vmatprep.subr.mxu0 0.0
      %1228 = vmatpush1.msra.mxu0 0.0
      %1229 = vmatprep.mubr.f32.mxu0 0.0
      %v1230 = vand.u32 %v562, 4294901760
      %1231 = vmatmul.mubr.f32.gmra.mrb[0].mxu0 %v1230
      %v1232 = vpop.f32.mrb[0].mxu0
      %v1233 = vadd.f32 %v1143, %v1232
      %v1234 = vpop.f32.mrb[0].mxu0
      %v1235 = vadd.f32 %v1145, %v1234
      %1236 = vdwg.mxu0
      %vm1237 = vcmp.gt.f32.partialorder %v1233, 0.0
      %vm1238 = vcmp.gt.f32.partialorder %v1235, 0.0
      %v1239 = vld [vmem:[%s4] sm:$0xff]
      %1241 = vset.pattern.permute.xlu0 0
      %1242 = vperm.xlu0 %1241, %v1239
      %v1243 = vpop.permute.xlu0 %1242
      %v1245 = vmul.f32 %v1233, %v1243
      %v1246 = vmul.f32 %v1235, %v1243
      %v1247 = vsel %vm1237, %v1233, %v1245
      %v1248 = vsel %vm1238, %v1235, %v1246
      %1249 = vrot.lane.b32.xlu0 %v1247, 17
      %v1250 = vpop.permute.xlu0 %1249
      %1251 = vrot.lane.b32.xlu0 %v1248, 17
      %v1252 = vpop.permute.xlu0 %1251
      %v1253 = vsel %vm346, %v1250, %v1252
      %v1254 = vsel %vm346, %v1252, %v1250
      %v1255 = vld [vmem:[%s0] ss:$8 sm:$0x3]
      %v1257 = vlaneseq
      %v1258 = vshrl.u32 %v1257, 7
      %v1259 = vsub.s32 0, %v1258
      %v1260 = vrot.slane %v1255, %v1259
      %v1261 = vlaneseq
      %v1262 = vshrl.u32 %v1261, 7
      %v1263 = vsub.s32 1, %v1262
      %v1264 = vrot.slane %v1255, %v1263
      %v1267 = vmul.f32 %v1254, %v1260
      %v1268 = vmul.f32 %v1253, %v1264
      %1269 = vst [vmem:[#allocation3] sm:$0xff] %v1267
      %1270 = vst [vmem:[#allocation3 + $0x8] sm:$0xff] %v1268
      %1271 = vrot.lane.b32.xlu0 %v1247, 16
      %v1272 = vpop.permute.xlu0 %1271
      %1273 = vrot.lane.b32.xlu0 %v1248, 16
      %v1274 = vpop.permute.xlu0 %1273
      %v1275 = vsel %vm369, %v1272, %v1274
      %v1276 = vsel %vm369, %v1274, %v1272
      %v1277 = vld [vmem:[%s372] ss:$8 sm:$0x3]
      %v1279 = vlaneseq
      %v1280 = vshrl.u32 %v1279, 7
      %v1281 = vsub.s32 0, %v1280
      %v1282 = vrot.slane %v1277, %v1281
      %v1283 = vlaneseq
      %v1284 = vshrl.u32 %v1283, 7
      %v1285 = vsub.s32 1, %v1284
      %v1286 = vrot.slane %v1277, %v1285
      %v1289 = vmul.f32 %v1276, %v1282
      %v1290 = vmul.f32 %v1275, %v1286
      %1291 = vst [vmem:[#allocation3 + $0x10] sm:$0xff] %v1289
      %1292 = vst [vmem:[#allocation3 + $0x18] sm:$0xff] %v1290
      %1293 = vrot.lane.b32.xlu0 %v1247, 15
      %v1294 = vpop.permute.xlu0 %1293
      %1295 = vrot.lane.b32.xlu0 %v1248, 15
      %v1296 = vpop.permute.xlu0 %1295
      %v1297 = vsel %vm393, %v1294, %v1296
      %v1298 = vsel %vm393, %v1296, %v1294
      %v1299 = vld [vmem:[%s396] ss:$8 sm:$0x3]
      %v1301 = vlaneseq
      %v1302 = vshrl.u32 %v1301, 7
      %v1303 = vsub.s32 0, %v1302
      %v1304 = vrot.slane %v1299, %v1303
      %v1305 = vlaneseq
      %v1306 = vshrl.u32 %v1305, 7
      %v1307 = vsub.s32 1, %v1306
      %v1308 = vrot.slane %v1299, %v1307
      %v1311 = vmul.f32 %v1298, %v1304
      %v1312 = vmul.f32 %v1297, %v1308
      %1313 = vst [vmem:[#allocation3 + $0x20] sm:$0xff] %v1311
      %1314 = vst [vmem:[#allocation3 + $0x28] sm:$0xff] %v1312
      %1315 = vrot.lane.b32.xlu0 %v1247, 1
      %v1316 = vpop.permute.xlu0 %1315
      %1317 = vrot.lane.b32.xlu0 %v1248, 1
      %v1318 = vpop.permute.xlu0 %1317
      %v1319 = vsel %vm417, %v1316, %v1318
      %v1320 = vsel %vm417, %v1318, %v1316
      %v1321 = vld [vmem:[%s420] ss:$8 sm:$0x3]
      %v1323 = vlaneseq
      %v1324 = vshrl.u32 %v1323, 7
      %v1325 = vsub.s32 0, %v1324
      %v1326 = vrot.slane %v1321, %v1325
      %v1327 = vlaneseq
      %v1328 = vshrl.u32 %v1327, 7
      %v1329 = vsub.s32 1, %v1328
      %v1330 = vrot.slane %v1321, %v1329
      %v1333 = vmul.f32 %v1320, %v1326
      %v1334 = vmul.f32 %v1319, %v1330
      %1335 = vst [vmem:[#allocation3 + $0x30] sm:$0xff] %v1333
      %1336 = vst [vmem:[#allocation3 + $0x38] sm:$0xff] %v1334
      %1337 = vst [vmem:[#allocation3 + $0x40] sm:$0xff] %v1247
      %1338 = vst [vmem:[#allocation3 + $0x48] sm:$0xff] %v1248
      %1339 = vrot.lane.b32.xlu0 %v1247, 127
      %v1340 = vpop.permute.xlu0 %1339
      %1341 = vrot.lane.b32.xlu0 %v1248, 127
      %v1342 = vpop.permute.xlu0 %1341
      %v1343 = vsel %vm443, %v1340, %v1342
      %v1344 = vsel %vm443, %v1342, %v1340
      %v1345 = vld [vmem:[%s446] ss:$8 sm:$0x3]
      %v1347 = vlaneseq
      %v1348 = vshrl.u32 %v1347, 7
      %v1349 = vsub.s32 0, %v1348
      %v1350 = vrot.slane %v1345, %v1349
      %v1351 = vlaneseq
      %v1352 = vshrl.u32 %v1351, 7
      %v1353 = vsub.s32 1, %v1352
      %v1354 = vrot.slane %v1345, %v1353
      %v1357 = vmul.f32 %v1343, %v1350
      %v1358 = vmul.f32 %v1344, %v1354
      %1359 = vst [vmem:[#allocation3 + $0x50] sm:$0xff] %v1357
      %1360 = vst [vmem:[#allocation3 + $0x58] sm:$0xff] %v1358
      %1361 = vrot.lane.b32.xlu0 %v1247, 113
      %v1362 = vpop.permute.xlu0 %1361
      %1363 = vrot.lane.b32.xlu0 %v1248, 113
      %v1364 = vpop.permute.xlu0 %1363
      %v1365 = vsel %vm467, %v1362, %v1364
      %v1366 = vsel %vm467, %v1364, %v1362
      %v1367 = vld [vmem:[%s470] ss:$8 sm:$0x3]
      %v1369 = vlaneseq
      %v1370 = vshrl.u32 %v1369, 7
      %v1371 = vsub.s32 0, %v1370
      %v1372 = vrot.slane %v1367, %v1371
      %v1373 = vlaneseq
      %v1374 = vshrl.u32 %v1373, 7
      %v1375 = vsub.s32 1, %v1374
      %v1376 = vrot.slane %v1367, %v1375
      %v1379 = vmul.f32 %v1365, %v1372
      %v1380 = vmul.f32 %v1366, %v1376
      %1381 = vst [vmem:[#allocation3 + $0x60] sm:$0xff] %v1379
      %1382 = vst [vmem:[#allocation3 + $0x68] sm:$0xff] %v1380
      %1383 = vrot.lane.b32.xlu0 %v1247, 112
      %v1384 = vpop.permute.xlu0 %1383
      %1385 = vrot.lane.b32.xlu0 %v1248, 112
      %v1386 = vpop.permute.xlu0 %1385
      %v1387 = vsel %vm491, %v1384, %v1386
      %v1388 = vsel %vm491, %v1386, %v1384
      %v1389 = vld [vmem:[%s494] ss:$8 sm:$0x3]
      %v1391 = vlaneseq
      %v1392 = vshrl.u32 %v1391, 7
      %v1393 = vsub.s32 0, %v1392
      %v1394 = vrot.slane %v1389, %v1393
      %v1395 = vlaneseq
      %v1396 = vshrl.u32 %v1395, 7
      %v1397 = vsub.s32 1, %v1396
      %v1398 = vrot.slane %v1389, %v1397
      %v1401 = vmul.f32 %v1387, %v1394
      %v1402 = vmul.f32 %v1388, %v1398
      %1403 = vst [vmem:[#allocation3 + $0x70] sm:$0xff] %v1401
      %1404 = vst [vmem:[#allocation3 + $0x78] sm:$0xff] %v1402
      %1405 = vrot.lane.b32.xlu0 %v1247, 111
      %v1406 = vpop.permute.xlu0 %1405
      %1407 = vrot.lane.b32.xlu0 %v1248, 111
      %v1408 = vpop.permute.xlu0 %1407
      %v1409 = vsel %vm515, %v1406, %v1408
      %v1410 = vsel %vm515, %v1408, %v1406
      %v1411 = vld [vmem:[%s518] ss:$8 sm:$0x3]
      %v1413 = vlaneseq
      %v1414 = vshrl.u32 %v1413, 7
      %v1415 = vsub.s32 0, %v1414
      %v1416 = vrot.slane %v1411, %v1415
      %v1417 = vlaneseq
      %v1418 = vshrl.u32 %v1417, 7
      %v1419 = vsub.s32 1, %v1418
      %v1420 = vrot.slane %v1411, %v1419
      %v1423 = vmul.f32 %v1409, %v1416
      %v1424 = vmul.f32 %v1410, %v1420
      %1425 = vst [vmem:[#allocation3 + $0x80] sm:$0xff] %v1423
      %1426 = vst [vmem:[#allocation3 + $0x88] sm:$0xff] %v1424
      %v1427 = vld [vmem:[%s5] sm:$0xff]
      %v1428 = vld [vmem:[#allocation3] sm:$0xff]
      %v1429 = vld [vmem:[#allocation3 + $0x8] sm:$0xff]
      %v1430 = vld [vmem:[#allocation3 + $0x10] sm:$0xff]
      %v1431 = vld [vmem:[#allocation3 + $0x18] sm:$0xff]
      %v1432 = vld [vmem:[#allocation3 + $0x20] sm:$0xff]
      %v1433 = vld [vmem:[#allocation3 + $0x28] sm:$0xff]
      %v1434 = vld [vmem:[#allocation3 + $0x30] sm:$0xff]
      %v1435 = vld [vmem:[#allocation3 + $0x38] sm:$0xff]
      %v1436 = vld [vmem:[#allocation3 + $0x40] sm:$0xff]
      %v1437 = vld [vmem:[#allocation3 + $0x48] sm:$0xff]
      %v1438 = vld [vmem:[#allocation3 + $0x50] sm:$0xff]
      %v1439 = vld [vmem:[#allocation3 + $0x58] sm:$0xff]
      %v1440 = vld [vmem:[#allocation3 + $0x60] sm:$0xff]
      %v1441 = vld [vmem:[#allocation3 + $0x68] sm:$0xff]
      %v1442 = vld [vmem:[#allocation3 + $0x70] sm:$0xff]
      %v1443 = vld [vmem:[#allocation3 + $0x78] sm:$0xff]
      %v1444 = vld [vmem:[#allocation3 + $0x80] sm:$0xff]
      %v1445 = vld [vmem:[#allocation3 + $0x88] sm:$0xff]
      %v1446 = vld [vmem:[%s6] sm:$0xff]
      %1448 = vset.pattern.permute.xlu0 0
      %1449 = vperm.xlu0 %1448, %v1446
      %v1450 = vpop.permute.xlu0 %1449
      %v1453 = vsel %vm560, %v1427, 0
      %v1455 = vand.u32 %v1429, 4294901760
      %1456 = vmatprep.subr.mxu0 %v1455
      %v1457 = vand.u32 %v1428, 4294901760
      %1458 = vmatpush1.msra.mxu0 %v1457
      %v1459 = vand.u32 %v1431, 4294901760
      %1460 = vmatprep.subr.mxu0 %v1459
      %v1461 = vand.u32 %v1430, 4294901760
      %1462 = vmatpush1.msra.mxu0 %v1461
      %v1463 = vand.u32 %v1433, 4294901760
      %1464 = vmatprep.subr.mxu0 %v1463
      %v1465 = vand.u32 %v1432, 4294901760
      %1466 = vmatpush1.msra.mxu0 %v1465
      %v1467 = vand.u32 %v1435, 4294901760
      %1468 = vmatprep.subr.mxu0 %v1467
      %v1469 = vand.u32 %v1434, 4294901760
      %1470 = vmatpush1.msra.mxu0 %v1469
      %v1471 = vand.u32 %v1437, 4294901760
      %1472 = vmatprep.subr.mxu0 %v1471
      %v1473 = vand.u32 %v1436, 4294901760
      %1474 = vmatpush1.msra.mxu0 %v1473
      %v1475 = vand.u32 %v1439, 4294901760
      %1476 = vmatprep.subr.mxu0 %v1475
      %v1477 = vand.u32 %v1438, 4294901760
      %1478 = vmatpush1.msra.mxu0 %v1477
      %v1479 = vand.u32 %v1441, 4294901760
      %1480 = vmatprep.subr.mxu0 %v1479
      %v1481 = vand.u32 %v1440, 4294901760
      %1482 = vmatpush1.msra.mxu0 %v1481
      %v1483 = vand.u32 %v1443, 4294901760
      %1484 = vmatprep.subr.mxu0 %v1483
      %v1485 = vand.u32 %v1442, 4294901760
      %1486 = vmatpush1.msra.mxu0 %v1485
      %v1487 = vand.u32 %v1445, 4294901760
      %1488 = vmatprep.subr.mxu0 %v1487
      %v1489 = vand.u32 %v1444, 4294901760
      %1490 = vmatpush1.msra.mxu0 %v1489
      %1491 = vmatprep.subr.mxu0 0.0
      %1492 = vmatpush1.msra.mxu0 0.0
      %1493 = vmatprep.subr.mxu0 0.0
      %1494 = vmatpush1.msra.mxu0 0.0
      %1495 = vmatprep.subr.mxu0 0.0
      %1496 = vmatpush1.msra.mxu0 0.0
      %1497 = vmatprep.subr.mxu0 0.0
      %1498 = vmatpush1.msra.mxu0 0.0
      %1499 = vmatprep.subr.mxu0 0.0
      %1500 = vmatpush1.msra.mxu0 0.0
      %1501 = vmatprep.subr.mxu0 0.0
      %1502 = vmatpush1.msra.mxu0 0.0
      %1503 = vmatprep.subr.mxu0 0.0
      %1504 = vmatpush1.msra.mxu0 0.0
      %1505 = vmatprep.subr.mxu0 0.0
      %1506 = vmatpush1.msra.mxu0 0.0
      %1507 = vmatprep.subr.mxu0 0.0
      %1508 = vmatpush1.msra.mxu0 0.0
      %1509 = vmatprep.subr.mxu0 0.0
      %1510 = vmatpush1.msra.mxu0 0.0
      %1511 = vmatprep.subr.mxu0 0.0
      %1512 = vmatpush1.msra.mxu0 0.0
      %1513 = vmatprep.subr.mxu0 0.0
      %1514 = vmatpush1.msra.mxu0 0.0
      %1515 = vmatprep.subr.mxu0 0.0
      %1516 = vmatpush1.msra.mxu0 0.0
      %1517 = vmatprep.subr.mxu0 0.0
      %1518 = vmatpush1.msra.mxu0 0.0
      %1519 = vmatprep.subr.mxu0 0.0
      %1520 = vmatpush1.msra.mxu0 0.0
      %1521 = vmatprep.subr.mxu0 0.0
      %1522 = vmatpush1.msra.mxu0 0.0
      %1523 = vmatprep.subr.mxu0 0.0
      %1524 = vmatpush1.msra.mxu0 0.0
      %1525 = vmatprep.subr.mxu0 0.0
      %1526 = vmatpush1.msra.mxu0 0.0
      %1527 = vmatprep.subr.mxu0 0.0
      %1528 = vmatpush1.msra.mxu0 0.0
      %1529 = vmatprep.subr.mxu0 0.0
      %1530 = vmatpush1.msra.mxu0 0.0
      %1531 = vmatprep.subr.mxu0 0.0
      %1532 = vmatpush1.msra.mxu0 0.0
      %1533 = vmatprep.subr.mxu0 0.0
      %1534 = vmatpush1.msra.mxu0 0.0
      %1535 = vmatprep.subr.mxu0 0.0
      %1536 = vmatpush1.msra.mxu0 0.0
      %1537 = vmatprep.mubr.f32.mxu0 0.0
      %v1538 = vand.u32 %v1453, 4294901760
      %v1539 = vsub.f32 %v1453, %v1538
      %v1540 = vand.u32 %v1539, 4294901760
      %v1541 = vsub.f32 %v1539, %v1540
      %v1542 = vand.u32 %v1541, 4294901760
      %1543 = vmatmul.mubr.f32.gmra.mrb[0].mxu0 %v1542
      %v1544 = vpop.f32.mrb[0].mxu0
      %v1545 = vadd.f32 %v1450, %v1544
      %v1546 = vpop.f32.mrb[0].mxu0
      %v1547 = vadd.f32 %v1450, %v1546
      %1548 = vdwg.mxu0
      %v1549 = vand.u32 %v1429, 4294901760
      %v1550 = vsub.f32 %v1429, %v1549
      %v1551 = vand.u32 %v1550, 4294901760
      %v1552 = vsub.f32 %v1550, %v1551
      %v1553 = vand.u32 %v1552, 4294901760
      %1554 = vmatprep.subr.mxu0 %v1553
      %v1555 = vand.u32 %v1428, 4294901760
      %v1556 = vsub.f32 %v1428, %v1555
      %v1557 = vand.u32 %v1556, 4294901760
      %v1558 = vsub.f32 %v1556, %v1557
      %v1559 = vand.u32 %v1558, 4294901760
      %1560 = vmatpush1.msra.mxu0 %v1559
      %v1561 = vand.u32 %v1431, 4294901760
      %v1562 = vsub.f32 %v1431, %v1561
      %v1563 = vand.u32 %v1562, 4294901760
      %v1564 = vsub.f32 %v1562, %v1563
      %v1565 = vand.u32 %v1564, 4294901760
      %1566 = vmatprep.subr.mxu0 %v1565
      %v1567 = vand.u32 %v1430, 4294901760
      %v1568 = vsub.f32 %v1430, %v1567
      %v1569 = vand.u32 %v1568, 4294901760
      %v1570 = vsub.f32 %v1568, %v1569
      %v1571 = vand.u32 %v1570, 4294901760
      %1572 = vmatpush1.msra.mxu0 %v1571
      %v1573 = vand.u32 %v1433, 4294901760
      %v1574 = vsub.f32 %v1433, %v1573
      %v1575 = vand.u32 %v1574, 4294901760
      %v1576 = vsub.f32 %v1574, %v1575
      %v1577 = vand.u32 %v1576, 4294901760
      %1578 = vmatprep.subr.mxu0 %v1577
      %v1579 = vand.u32 %v1432, 4294901760
      %v1580 = vsub.f32 %v1432, %v1579
      %v1581 = vand.u32 %v1580, 4294901760
      %v1582 = vsub.f32 %v1580, %v1581
      %v1583 = vand.u32 %v1582, 4294901760
      %1584 = vmatpush1.msra.mxu0 %v1583
      %v1585 = vand.u32 %v1435, 4294901760
      %v1586 = vsub.f32 %v1435, %v1585
      %v1587 = vand.u32 %v1586, 4294901760
      %v1588 = vsub.f32 %v1586, %v1587
      %v1589 = vand.u32 %v1588, 4294901760
      %1590 = vmatprep.subr.mxu0 %v1589
      %v1591 = vand.u32 %v1434, 4294901760
      %v1592 = vsub.f32 %v1434, %v1591
      %v1593 = vand.u32 %v1592, 4294901760
      %v1594 = vsub.f32 %v1592, %v1593
      %v1595 = vand.u32 %v1594, 4294901760
      %1596 = vmatpush1.msra.mxu0 %v1595
      %v1597 = vand.u32 %v1437, 4294901760
      %v1598 = vsub.f32 %v1437, %v1597
      %v1599 = vand.u32 %v1598, 4294901760
      %v1600 = vsub.f32 %v1598, %v1599
      %v1601 = vand.u32 %v1600, 4294901760
      %1602 = vmatprep.subr.mxu0 %v1601
      %v1603 = vand.u32 %v1436, 4294901760
      %v1604 = vsub.f32 %v1436, %v1603
      %v1605 = vand.u32 %v1604, 4294901760
      %v1606 = vsub.f32 %v1604, %v1605
      %v1607 = vand.u32 %v1606, 4294901760
      %1608 = vmatpush1.msra.mxu0 %v1607
      %v1609 = vand.u32 %v1439, 4294901760
      %v1610 = vsub.f32 %v1439, %v1609
      %v1611 = vand.u32 %v1610, 4294901760
      %v1612 = vsub.f32 %v1610, %v1611
      %v1613 = vand.u32 %v1612, 4294901760
      %1614 = vmatprep.subr.mxu0 %v1613
      %v1615 = vand.u32 %v1438, 4294901760
      %v1616 = vsub.f32 %v1438, %v1615
      %v1617 = vand.u32 %v1616, 4294901760
      %v1618 = vsub.f32 %v1616, %v1617
      %v1619 = vand.u32 %v1618, 4294901760
      %1620 = vmatpush1.msra.mxu0 %v1619
      %v1621 = vand.u32 %v1441, 4294901760
      %v1622 = vsub.f32 %v1441, %v1621
      %v1623 = vand.u32 %v1622, 4294901760
      %v1624 = vsub.f32 %v1622, %v1623
      %v1625 = vand.u32 %v1624, 4294901760
      %1626 = vmatprep.subr.mxu0 %v1625
      %v1627 = vand.u32 %v1440, 4294901760
      %v1628 = vsub.f32 %v1440, %v1627
      %v1629 = vand.u32 %v1628, 4294901760
      %v1630 = vsub.f32 %v1628, %v1629
      %v1631 = vand.u32 %v1630, 4294901760
      %1632 = vmatpush1.msra.mxu0 %v1631
      %v1633 = vand.u32 %v1443, 4294901760
      %v1634 = vsub.f32 %v1443, %v1633
      %v1635 = vand.u32 %v1634, 4294901760
      %v1636 = vsub.f32 %v1634, %v1635
      %v1637 = vand.u32 %v1636, 4294901760
      %1638 = vmatprep.subr.mxu0 %v1637
      %v1639 = vand.u32 %v1442, 4294901760
      %v1640 = vsub.f32 %v1442, %v1639
      %v1641 = vand.u32 %v1640, 4294901760
      %v1642 = vsub.f32 %v1640, %v1641
      %v1643 = vand.u32 %v1642, 4294901760
      %1644 = vmatpush1.msra.mxu0 %v1643
      %v1645 = vand.u32 %v1445, 4294901760
      %v1646 = vsub.f32 %v1445, %v1645
      %v1647 = vand.u32 %v1646, 4294901760
      %v1648 = vsub.f32 %v1646, %v1647
      %v1649 = vand.u32 %v1648, 4294901760
      %1650 = vmatprep.subr.mxu0 %v1649
      %v1651 = vand.u32 %v1444, 4294901760
      %v1652 = vsub.f32 %v1444, %v1651
      %v1653 = vand.u32 %v1652, 4294901760
      %v1654 = vsub.f32 %v1652, %v1653
      %v1655 = vand.u32 %v1654, 4294901760
      %1656 = vmatpush1.msra.mxu0 %v1655
      %1657 = vmatprep.subr.mxu0 0.0
      %1658 = vmatpush1.msra.mxu0 0.0
      %1659 = vmatprep.subr.mxu0 0.0
      %1660 = vmatpush1.msra.mxu0 0.0
      %1661 = vmatprep.subr.mxu0 0.0
      %1662 = vmatpush1.msra.mxu0 0.0
      %1663 = vmatprep.subr.mxu0 0.0
      %1664 = vmatpush1.msra.mxu0 0.0
      %1665 = vmatprep.subr.mxu0 0.0
      %1666 = vmatpush1.msra.mxu0 0.0
      %1667 = vmatprep.subr.mxu0 0.0
      %1668 = vmatpush1.msra.mxu0 0.0
      %1669 = vmatprep.subr.mxu0 0.0
      %1670 = vmatpush1.msra.mxu0 0.0
      %1671 = vmatprep.subr.mxu0 0.0
      %1672 = vmatpush1.msra.mxu0 0.0
      %1673 = vmatprep.subr.mxu0 0.0
      %1674 = vmatpush1.msra.mxu0 0.0
      %1675 = vmatprep.subr.mxu0 0.0
      %1676 = vmatpush1.msra.mxu0 0.0
      %1677 = vmatprep.subr.mxu0 0.0
      %1678 = vmatpush1.msra.mxu0 0.0
      %1679 = vmatprep.subr.mxu0 0.0
      %1680 = vmatpush1.msra.mxu0 0.0
      %1681 = vmatprep.subr.mxu0 0.0
      %1682 = vmatpush1.msra.mxu0 0.0
      %1683 = vmatprep.subr.mxu0 0.0
      %1684 = vmatpush1.msra.mxu0 0.0
      %1685 = vmatprep.subr.mxu0 0.0
      %1686 = vmatpush1.msra.mxu0 0.0
      %1687 = vmatprep.subr.mxu0 0.0
      %1688 = vmatpush1.msra.mxu0 0.0
      %1689 = vmatprep.subr.mxu0 0.0
      %1690 = vmatpush1.msra.mxu0 0.0
      %1691 = vmatprep.subr.mxu0 0.0
      %1692 = vmatpush1.msra.mxu0 0.0
      %1693 = vmatprep.subr.mxu0 0.0
      %1694 = vmatpush1.msra.mxu0 0.0
      %1695 = vmatprep.subr.mxu0 0.0
      %1696 = vmatpush1.msra.mxu0 0.0
      %1697 = vmatprep.subr.mxu0 0.0
      %1698 = vmatpush1.msra.mxu0 0.0
      %1699 = vmatprep.subr.mxu0 0.0
      %1700 = vmatpush1.msra.mxu0 0.0
      %1701 = vmatprep.subr.mxu0 0.0
      %1702 = vmatpush1.msra.mxu0 0.0
      %1703 = vmatprep.mubr.f32.mxu0 0.0
      %v1704 = vand.u32 %v1453, 4294901760
      %1705 = vmatmul.mubr.f32.gmra.mrb[0].mxu0 %v1704
      %v1706 = vpop.f32.mrb[0].mxu0
      %v1707 = vadd.f32 %v1545, %v1706
      %v1708 = vpop.f32.mrb[0].mxu0
      %v1709 = vadd.f32 %v1547, %v1708
      %1710 = vdwg.mxu0
      %v1711 = vand.u32 %v1429, 4294901760
      %v1712 = vsub.f32 %v1429, %v1711
      %1713 = vmatprep.subr.mxu0 %v1712
      %v1714 = vand.u32 %v1428, 4294901760
      %v1715 = vsub.f32 %v1428, %v1714
      %1716 = vmatpush1.msra.mxu0 %v1715
      %v1717 = vand.u32 %v1431, 4294901760
      %v1718 = vsub.f32 %v1431, %v1717
      %1719 = vmatprep.subr.mxu0 %v1718
      %v1720 = vand.u32 %v1430, 4294901760
      %v1721 = vsub.f32 %v1430, %v1720
      %1722 = vmatpush1.msra.mxu0 %v1721
      %v1723 = vand.u32 %v1433, 4294901760
      %v1724 = vsub.f32 %v1433, %v1723
      %1725 = vmatprep.subr.mxu0 %v1724
      %v1726 = vand.u32 %v1432, 4294901760
      %v1727 = vsub.f32 %v1432, %v1726
      %1728 = vmatpush1.msra.mxu0 %v1727
      %v1729 = vand.u32 %v1435, 4294901760
      %v1730 = vsub.f32 %v1435, %v1729
      %1731 = vmatprep.subr.mxu0 %v1730
      %v1732 = vand.u32 %v1434, 4294901760
      %v1733 = vsub.f32 %v1434, %v1732
      %1734 = vmatpush1.msra.mxu0 %v1733
      %v1735 = vand.u32 %v1437, 4294901760
      %v1736 = vsub.f32 %v1437, %v1735
      %1737 = vmatprep.subr.mxu0 %v1736
      %v1738 = vand.u32 %v1436, 4294901760
      %v1739 = vsub.f32 %v1436, %v1738
      %1740 = vmatpush1.msra.mxu0 %v1739
      %v1741 = vand.u32 %v1439, 4294901760
      %v1742 = vsub.f32 %v1439, %v1741
      %1743 = vmatprep.subr.mxu0 %v1742
      %v1744 = vand.u32 %v1438, 4294901760
      %v1745 = vsub.f32 %v1438, %v1744
      %1746 = vmatpush1.msra.mxu0 %v1745
      %v1747 = vand.u32 %v1441, 4294901760
      %v1748 = vsub.f32 %v1441, %v1747
      %1749 = vmatprep.subr.mxu0 %v1748
      %v1750 = vand.u32 %v1440, 4294901760
      %v1751 = vsub.f32 %v1440, %v1750
      %1752 = vmatpush1.msra.mxu0 %v1751
      %v1753 = vand.u32 %v1443, 4294901760
      %v1754 = vsub.f32 %v1443, %v1753
      %1755 = vmatprep.subr.mxu0 %v1754
      %v1756 = vand.u32 %v1442, 4294901760
      %v1757 = vsub.f32 %v1442, %v1756
      %1758 = vmatpush1.msra.mxu0 %v1757
      %v1759 = vand.u32 %v1445, 4294901760
      %v1760 = vsub.f32 %v1445, %v1759
      %1761 = vmatprep.subr.mxu0 %v1760
      %v1762 = vand.u32 %v1444, 4294901760
      %v1763 = vsub.f32 %v1444, %v1762
      %1764 = vmatpush1.msra.mxu0 %v1763
      %1765 = vmatprep.subr.mxu0 0.0
      %1766 = vmatpush1.msra.mxu0 0.0
      %1767 = vmatprep.subr.mxu0 0.0
      %1768 = vmatpush1.msra.mxu0 0.0
      %1769 = vmatprep.subr.mxu0 0.0
      %1770 = vmatpush1.msra.mxu0 0.0
      %1771 = vmatprep.subr.mxu0 0.0
      %1772 = vmatpush1.msra.mxu0 0.0
      %1773 = vmatprep.subr.mxu0 0.0
      %1774 = vmatpush1.msra.mxu0 0.0
      %1775 = vmatprep.subr.mxu0 0.0
      %1776 = vmatpush1.msra.mxu0 0.0
      %1777 = vmatprep.subr.mxu0 0.0
      %1778 = vmatpush1.msra.mxu0 0.0
      %1779 = vmatprep.subr.mxu0 0.0
      %1780 = vmatpush1.msra.mxu0 0.0
      %1781 = vmatprep.subr.mxu0 0.0
      %1782 = vmatpush1.msra.mxu0 0.0
      %1783 = vmatprep.subr.mxu0 0.0
      %1784 = vmatpush1.msra.mxu0 0.0
      %1785 = vmatprep.subr.mxu0 0.0
      %1786 = vmatpush1.msra.mxu0 0.0
      %1787 = vmatprep.subr.mxu0 0.0
      %1788 = vmatpush1.msra.mxu0 0.0
      %1789 = vmatprep.subr.mxu0 0.0
      %1790 = vmatpush1.msra.mxu0 0.0
      %1791 = vmatprep.subr.mxu0 0.0
      %1792 = vmatpush1.msra.mxu0 0.0
      %1793 = vmatprep.subr.mxu0 0.0
      %1794 = vmatpush1.msra.mxu0 0.0
      %1795 = vmatprep.subr.mxu0 0.0
      %1796 = vmatpush1.msra.mxu0 0.0
      %1797 = vmatprep.subr.mxu0 0.0
      %1798 = vmatpush1.msra.mxu0 0.0
      %1799 = vmatprep.subr.mxu0 0.0
      %1800 = vmatpush1.msra.mxu0 0.0
      %1801 = vmatprep.subr.mxu0 0.0
      %1802 = vmatpush1.msra.mxu0 0.0
      %1803 = vmatprep.subr.mxu0 0.0
      %1804 = vmatpush1.msra.mxu0 0.0
      %1805 = vmatprep.subr.mxu0 0.0
      %1806 = vmatpush1.msra.mxu0 0.0
      %1807 = vmatprep.subr.mxu0 0.0
      %1808 = vmatpush1.msra.mxu0 0.0
      %1809 = vmatprep.subr.mxu0 0.0
      %1810 = vmatpush1.msra.mxu0 0.0
      %1811 = vmatprep.mubr.f32.mxu0 0.0
      %v1812 = vand.u32 %v1453, 4294901760
      %v1813 = vsub.f32 %v1453, %v1812
      %1814 = vmatmul.mubr.f32.gmra.mrb[0].mxu0 %v1813
      %v1815 = vpop.f32.mrb[0].mxu0
      %v1816 = vadd.f32 %v1707, %v1815
      %v1817 = vpop.f32.mrb[0].mxu0
      %v1818 = vadd.f32 %v1709, %v1817
      %1819 = vdwg.mxu0
      %v1820 = vand.u32 %v1429, 4294901760
      %1821 = vmatprep.subr.mxu0 %v1820
      %v1822 = vand.u32 %v1428, 4294901760
      %1823 = vmatpush1.msra.mxu0 %v1822
      %v1824 = vand.u32 %v1431, 4294901760
      %1825 = vmatprep.subr.mxu0 %v1824
      %v1826 = vand.u32 %v1430, 4294901760
      %1827 = vmatpush1.msra.mxu0 %v1826
      %v1828 = vand.u32 %v1433, 4294901760
      %1829 = vmatprep.subr.mxu0 %v1828
      %v1830 = vand.u32 %v1432, 4294901760
      %1831 = vmatpush1.msra.mxu0 %v1830
      %v1832 = vand.u32 %v1435, 4294901760
      %1833 = vmatprep.subr.mxu0 %v1832
      %v1834 = vand.u32 %v1434, 4294901760
      %1835 = vmatpush1.msra.mxu0 %v1834
      %v1836 = vand.u32 %v1437, 4294901760
      %1837 = vmatprep.subr.mxu0 %v1836
      %v1838 = vand.u32 %v1436, 4294901760
      %1839 = vmatpush1.msra.mxu0 %v1838
      %v1840 = vand.u32 %v1439, 4294901760
      %1841 = vmatprep.subr.mxu0 %v1840
      %v1842 = vand.u32 %v1438, 4294901760
      %1843 = vmatpush1.msra.mxu0 %v1842
      %v1844 = vand.u32 %v1441, 4294901760
      %1845 = vmatprep.subr.mxu0 %v1844
      %v1846 = vand.u32 %v1440, 4294901760
      %1847 = vmatpush1.msra.mxu0 %v1846
      %v1848 = vand.u32 %v1443, 4294901760
      %1849 = vmatprep.subr.mxu0 %v1848
      %v1850 = vand.u32 %v1442, 4294901760
      %1851 = vmatpush1.msra.mxu0 %v1850
      %v1852 = vand.u32 %v1445, 4294901760
      %1853 = vmatprep.subr.mxu0 %v1852
      %v1854 = vand.u32 %v1444, 4294901760
      %1855 = vmatpush1.msra.mxu0 %v1854
      %1856 = vmatprep.subr.mxu0 0.0
      %1857 = vmatpush1.msra.mxu0 0.0
      %1858 = vmatprep.subr.mxu0 0.0
      %1859 = vmatpush1.msra.mxu0 0.0
      %1860 = vmatprep.subr.mxu0 0.0
      %1861 = vmatpush1.msra.mxu0 0.0
      %1862 = vmatprep.subr.mxu0 0.0
      %1863 = vmatpush1.msra.mxu0 0.0
      %1864 = vmatprep.subr.mxu0 0.0
      %1865 = vmatpush1.msra.mxu0 0.0
      %1866 = vmatprep.subr.mxu0 0.0
      %1867 = vmatpush1.msra.mxu0 0.0
      %1868 = vmatprep.subr.mxu0 0.0
      %1869 = vmatpush1.msra.mxu0 0.0
      %1870 = vmatprep.subr.mxu0 0.0
      %1871 = vmatpush1.msra.mxu0 0.0
      %1872 = vmatprep.subr.mxu0 0.0
      %1873 = vmatpush1.msra.mxu0 0.0
      %1874 = vmatprep.subr.mxu0 0.0
      %1875 = vmatpush1.msra.mxu0 0.0
      %1876 = vmatprep.subr.mxu0 0.0
      %1877 = vmatpush1.msra.mxu0 0.0
      %1878 = vmatprep.subr.mxu0 0.0
      %1879 = vmatpush1.msra.mxu0 0.0
      %1880 = vmatprep.subr.mxu0 0.0
      %1881 = vmatpush1.msra.mxu0 0.0
      %1882 = vmatprep.subr.mxu0 0.0
      %1883 = vmatpush1.msra.mxu0 0.0
      %1884 = vmatprep.subr.mxu0 0.0
      %1885 = vmatpush1.msra.mxu0 0.0
      %1886 = vmatprep.subr.mxu0 0.0
      %1887 = vmatpush1.msra.mxu0 0.0
      %1888 = vmatprep.subr.mxu0 0.0
      %1889 = vmatpush1.msra.mxu0 0.0
      %1890 = vmatprep.subr.mxu0 0.0
      %1891 = vmatpush1.msra.mxu0 0.0
      %1892 = vmatprep.subr.mxu0 0.0
      %1893 = vmatpush1.msra.mxu0 0.0
      %1894 = vmatprep.subr.mxu0 0.0
      %1895 = vmatpush1.msra.mxu0 0.0
      %1896 = vmatprep.subr.mxu0 0.0
      %1897 = vmatpush1.msra.mxu0 0.0
      %1898 = vmatprep.subr.mxu0 0.0
      %1899 = vmatpush1.msra.mxu0 0.0
      %1900 = vmatprep.subr.mxu0 0.0
      %1901 = vmatpush1.msra.mxu0 0.0
      %1902 = vmatprep.mubr.f32.mxu0 0.0
      %v1903 = vand.u32 %v1453, 4294901760
      %v1904 = vsub.f32 %v1453, %v1903
      %v1905 = vand.u32 %v1904, 4294901760
      %1906 = vmatmul.mubr.f32.gmra.mrb[0].mxu0 %v1905
      %v1907 = vpop.f32.mrb[0].mxu0
      %v1908 = vadd.f32 %v1816, %v1907
      %v1909 = vpop.f32.mrb[0].mxu0
      %v1910 = vadd.f32 %v1818, %v1909
      %1911 = vdwg.mxu0
      %v1912 = vand.u32 %v1429, 4294901760
      %v1913 = vsub.f32 %v1429, %v1912
      %v1914 = vand.u32 %v1913, 4294901760
      %1915 = vmatprep.subr.mxu0 %v1914
      %v1916 = vand.u32 %v1428, 4294901760
      %v1917 = vsub.f32 %v1428, %v1916
      %v1918 = vand.u32 %v1917, 4294901760
      %1919 = vmatpush1.msra.mxu0 %v1918
      %v1920 = vand.u32 %v1431, 4294901760
      %v1921 = vsub.f32 %v1431, %v1920
      %v1922 = vand.u32 %v1921, 4294901760
      %1923 = vmatprep.subr.mxu0 %v1922
      %v1924 = vand.u32 %v1430, 4294901760
      %v1925 = vsub.f32 %v1430, %v1924
      %v1926 = vand.u32 %v1925, 4294901760
      %1927 = vmatpush1.msra.mxu0 %v1926
      %v1928 = vand.u32 %v1433, 4294901760
      %v1929 = vsub.f32 %v1433, %v1928
      %v1930 = vand.u32 %v1929, 4294901760
      %1931 = vmatprep.subr.mxu0 %v1930
      %v1932 = vand.u32 %v1432, 4294901760
      %v1933 = vsub.f32 %v1432, %v1932
      %v1934 = vand.u32 %v1933, 4294901760
      %1935 = vmatpush1.msra.mxu0 %v1934
      %v1936 = vand.u32 %v1435, 4294901760
      %v1937 = vsub.f32 %v1435, %v1936
      %v1938 = vand.u32 %v1937, 4294901760
      %1939 = vmatprep.subr.mxu0 %v1938
      %v1940 = vand.u32 %v1434, 4294901760
      %v1941 = vsub.f32 %v1434, %v1940
      %v1942 = vand.u32 %v1941, 4294901760
      %1943 = vmatpush1.msra.mxu0 %v1942
      %v1944 = vand.u32 %v1437, 4294901760
      %v1945 = vsub.f32 %v1437, %v1944
      %v1946 = vand.u32 %v1945, 4294901760
      %1947 = vmatprep.subr.mxu0 %v1946
      %v1948 = vand.u32 %v1436, 4294901760
      %v1949 = vsub.f32 %v1436, %v1948
      %v1950 = vand.u32 %v1949, 4294901760
      %1951 = vmatpush1.msra.mxu0 %v1950
      %v1952 = vand.u32 %v1439, 4294901760
      %v1953 = vsub.f32 %v1439, %v1952
      %v1954 = vand.u32 %v1953, 4294901760
      %1955 = vmatprep.subr.mxu0 %v1954
      %v1956 = vand.u32 %v1438, 4294901760
      %v1957 = vsub.f32 %v1438, %v1956
      %v1958 = vand.u32 %v1957, 4294901760
      %1959 = vmatpush1.msra.mxu0 %v1958
      %v1960 = vand.u32 %v1441, 4294901760
      %v1961 = vsub.f32 %v1441, %v1960
      %v1962 = vand.u32 %v1961, 4294901760
      %1963 = vmatprep.subr.mxu0 %v1962
      %v1964 = vand.u32 %v1440, 4294901760
      %v1965 = vsub.f32 %v1440, %v1964
      %v1966 = vand.u32 %v1965, 4294901760
      %1967 = vmatpush1.msra.mxu0 %v1966
      %v1968 = vand.u32 %v1443, 4294901760
      %v1969 = vsub.f32 %v1443, %v1968
      %v1970 = vand.u32 %v1969, 4294901760
      %1971 = vmatprep.subr.mxu0 %v1970
      %v1972 = vand.u32 %v1442, 4294901760
      %v1973 = vsub.f32 %v1442, %v1972
      %v1974 = vand.u32 %v1973, 4294901760
      %1975 = vmatpush1.msra.mxu0 %v1974
      %v1976 = vand.u32 %v1445, 4294901760
      %v1977 = vsub.f32 %v1445, %v1976
      %v1978 = vand.u32 %v1977, 4294901760
      %1979 = vmatprep.subr.mxu0 %v1978
      %v1980 = vand.u32 %v1444, 4294901760
      %v1981 = vsub.f32 %v1444, %v1980
      %v1982 = vand.u32 %v1981, 4294901760
      %1983 = vmatpush1.msra.mxu0 %v1982
      %1984 = vmatprep.subr.mxu0 0.0
      %1985 = vmatpush1.msra.mxu0 0.0
      %1986 = vmatprep.subr.mxu0 0.0
      %1987 = vmatpush1.msra.mxu0 0.0
      %1988 = vmatprep.subr.mxu0 0.0
      %1989 = vmatpush1.msra.mxu0 0.0
      %1990 = vmatprep.subr.mxu0 0.0
      %1991 = vmatpush1.msra.mxu0 0.0
      %1992 = vmatprep.subr.mxu0 0.0
      %1993 = vmatpush1.msra.mxu0 0.0
      %1994 = vmatprep.subr.mxu0 0.0
      %1995 = vmatpush1.msra.mxu0 0.0
      %1996 = vmatprep.subr.mxu0 0.0
      %1997 = vmatpush1.msra.mxu0 0.0
      %1998 = vmatprep.subr.mxu0 0.0
      %1999 = vmatpush1.msra.mxu0 0.0
      %2000 = vmatprep.subr.mxu0 0.0
      %2001 = vmatpush1.msra.mxu0 0.0
      %2002 = vmatprep.subr.mxu0 0.0
      %2003 = vmatpush1.msra.mxu0 0.0
      %2004 = vmatprep.subr.mxu0 0.0
      %2005 = vmatpush1.msra.mxu0 0.0
      %2006 = vmatprep.subr.mxu0 0.0
      %2007 = vmatpush1.msra.mxu0 0.0
      %2008 = vmatprep.subr.mxu0 0.0
      %2009 = vmatpush1.msra.mxu0 0.0
      %2010 = vmatprep.subr.mxu0 0.0
      %2011 = vmatpush1.msra.mxu0 0.0
      %2012 = vmatprep.subr.mxu0 0.0
      %2013 = vmatpush1.msra.mxu0 0.0
      %2014 = vmatprep.subr.mxu0 0.0
      %2015 = vmatpush1.msra.mxu0 0.0
      %2016 = vmatprep.subr.mxu0 0.0
      %2017 = vmatpush1.msra.mxu0 0.0
      %2018 = vmatprep.subr.mxu0 0.0
      %2019 = vmatpush1.msra.mxu0 0.0
      %2020 = vmatprep.subr.mxu0 0.0
      %2021 = vmatpush1.msra.mxu0 0.0
      %2022 = vmatprep.subr.mxu0 0.0
      %2023 = vmatpush1.msra.mxu0 0.0
      %2024 = vmatprep.subr.mxu0 0.0
      %2025 = vmatpush1.msra.mxu0 0.0
      %2026 = vmatprep.subr.mxu0 0.0
      %2027 = vmatpush1.msra.mxu0 0.0
      %2028 = vmatprep.subr.mxu0 0.0
      %2029 = vmatpush1.msra.mxu0 0.0
      %2030 = vmatprep.mubr.f32.mxu0 0.0
      %v2031 = vand.u32 %v1453, 4294901760
      %2032 = vmatmul.mubr.f32.gmra.mrb[0].mxu0 %v2031
      %v2033 = vpop.f32.mrb[0].mxu0
      %v2034 = vadd.f32 %v1908, %v2033
      %v2035 = vpop.f32.mrb[0].mxu0
      %v2036 = vadd.f32 %v1910, %v2035
      %2037 = vdwg.mxu0
      %v2038 = vand.u32 %v1429, 4294901760
      %2039 = vmatprep.subr.mxu0 %v2038
      %v2040 = vand.u32 %v1428, 4294901760
      %2041 = vmatpush1.msra.mxu0 %v2040
      %v2042 = vand.u32 %v1431, 4294901760
      %2043 = vmatprep.subr.mxu0 %v2042
      %v2044 = vand.u32 %v1430, 4294901760
      %2045 = vmatpush1.msra.mxu0 %v2044
      %v2046 = vand.u32 %v1433, 4294901760
      %2047 = vmatprep.subr.mxu0 %v2046
      %v2048 = vand.u32 %v1432, 4294901760
      %2049 = vmatpush1.msra.mxu0 %v2048
      %v2050 = vand.u32 %v1435, 4294901760
      %2051 = vmatprep.subr.mxu0 %v2050
      %v2052 = vand.u32 %v1434, 4294901760
      %2053 = vmatpush1.msra.mxu0 %v2052
      %v2054 = vand.u32 %v1437, 4294901760
      %2055 = vmatprep.subr.mxu0 %v2054
      %v2056 = vand.u32 %v1436, 4294901760
      %2057 = vmatpush1.msra.mxu0 %v2056
      %v2058 = vand.u32 %v1439, 4294901760
      %2059 = vmatprep.subr.mxu0 %v2058
      %v2060 = vand.u32 %v1438, 4294901760
      %2061 = vmatpush1.msra.mxu0 %v2060
      %v2062 = vand.u32 %v1441, 4294901760
      %2063 = vmatprep.subr.mxu0 %v2062
      %v2064 = vand.u32 %v1440, 4294901760
      %2065 = vmatpush1.msra.mxu0 %v2064
      %v2066 = vand.u32 %v1443, 4294901760
      %2067 = vmatprep.subr.mxu0 %v2066
      %v2068 = vand.u32 %v1442, 4294901760
      %2069 = vmatpush1.msra.mxu0 %v2068
      %v2070 = vand.u32 %v1445, 4294901760
      %2071 = vmatprep.subr.mxu0 %v2070
      %v2072 = vand.u32 %v1444, 4294901760
      %2073 = vmatpush1.msra.mxu0 %v2072
      %2074 = vmatprep.subr.mxu0 0.0
      %2075 = vmatpush1.msra.mxu0 0.0
      %2076 = vmatprep.subr.mxu0 0.0
      %2077 = vmatpush1.msra.mxu0 0.0
      %2078 = vmatprep.subr.mxu0 0.0
      %2079 = vmatpush1.msra.mxu0 0.0
      %2080 = vmatprep.subr.mxu0 0.0
      %2081 = vmatpush1.msra.mxu0 0.0
      %2082 = vmatprep.subr.mxu0 0.0
      %2083 = vmatpush1.msra.mxu0 0.0
      %2084 = vmatprep.subr.mxu0 0.0
      %2085 = vmatpush1.msra.mxu0 0.0
      %2086 = vmatprep.subr.mxu0 0.0
      %2087 = vmatpush1.msra.mxu0 0.0
      %2088 = vmatprep.subr.mxu0 0.0
      %2089 = vmatpush1.msra.mxu0 0.0
      %2090 = vmatprep.subr.mxu0 0.0
      %2091 = vmatpush1.msra.mxu0 0.0
      %2092 = vmatprep.subr.mxu0 0.0
      %2093 = vmatpush1.msra.mxu0 0.0
      %2094 = vmatprep.subr.mxu0 0.0
      %2095 = vmatpush1.msra.mxu0 0.0
      %2096 = vmatprep.subr.mxu0 0.0
      %2097 = vmatpush1.msra.mxu0 0.0
      %2098 = vmatprep.subr.mxu0 0.0
      %2099 = vmatpush1.msra.mxu0 0.0
      %2100 = vmatprep.subr.mxu0 0.0
      %2101 = vmatpush1.msra.mxu0 0.0
      %2102 = vmatprep.subr.mxu0 0.0
      %2103 = vmatpush1.msra.mxu0 0.0
      %2104 = vmatprep.subr.mxu0 0.0
      %2105 = vmatpush1.msra.mxu0 0.0
      %2106 = vmatprep.subr.mxu0 0.0
      %2107 = vmatpush1.msra.mxu0 0.0
      %2108 = vmatprep.subr.mxu0 0.0
      %2109 = vmatpush1.msra.mxu0 0.0
      %2110 = vmatprep.subr.mxu0 0.0
      %2111 = vmatpush1.msra.mxu0 0.0
      %2112 = vmatprep.subr.mxu0 0.0
      %2113 = vmatpush1.msra.mxu0 0.0
      %2114 = vmatprep.subr.mxu0 0.0
      %2115 = vmatpush1.msra.mxu0 0.0
      %2116 = vmatprep.subr.mxu0 0.0
      %2117 = vmatpush1.msra.mxu0 0.0
      %2118 = vmatprep.subr.mxu0 0.0
      %2119 = vmatpush1.msra.mxu0 0.0
      %2120 = vmatprep.mubr.f32.mxu0 0.0
      %v2121 = vand.u32 %v1453, 4294901760
      %2122 = vmatmul.mubr.f32.gmra.mrb[0].mxu0 %v2121
      %v2123 = vpop.f32.mrb[0].mxu0
      %v2124 = vadd.f32 %v2034, %v2123
      %v2125 = vpop.f32.mrb[0].mxu0
      %v2126 = vadd.f32 %v2036, %v2125
      %2127 = vdwg.mxu0
      %s2128 = sld [smem:[#allocation4]]
      %v2129 = vstv %s2128
      %v2130 = vmul.f32 %v2129, %v338
      %v2131 = vmul.f32 %v2129, %v339
      %s2132 = sld [smem:[#allocation5]]
      %v2133 = vstv %s2132
      %v2134 = vmul.f32 %v2133, %v2124
      %v2135 = vmul.f32 %v2133, %v2126
      %v2136 = vadd.f32 %v2130, %v2134
      %v2137 = vadd.f32 %v2131, %v2135
      %v2140 = vcombine.low %v2136, %v2137
      %2142 = vst [vmem:[%s336] sm:$0xff] %v2140
      %s2143 = smul.u32 2, %s22
      %p2144 = scmp.lt.s32.totalorder %s2143, 3
      %s2145 = scalar_select %p2144, %s2143, 3
      %s2146 = smul.addr %s2145, 4
      %s2147 = scalar_lea.vmem %s9, %s2146
      // Predicated region
      $region57: #{one_conv_forward.1} parent=55 // pred_check
        %p2148 = pneg %p234
      $region58: #{one_conv_forward.1} parent=55 // pred_check_branch
        %2150 = sbr.rel (%p2148) target = $region60
      $region59: #{one_conv_forward.1} parent=55 // pred_region
        %s2151 = smul.u32 2, %s22
      $region60: #{one_conv_forward.1} parent=55 // pred_fallthru
        _
    $region56: #{one_conv_forward.1} parent=5 // pred_fallthru
      _
    %p2152 = scmp.le.s32.totalorder 2, %s17
    // Predicated region
    $region61: #{one_conv_forward.1} parent=5 // pred_check
      %p2153 = pneg %p2152
    $region62: #{one_conv_forward.1} parent=5 // pred_check_branch
      %2155 = sbr.rel (%p2153) target = $region64
    $region63: #{one_conv_forward.1} parent=5 // pred_region
      %s2156 = ssub.s32 %s17, 2
      // Predicated region
      $region65: #{one_conv_forward.1} parent=63 // pred_check
        %p2157 = pneg %p240
      $region66: #{one_conv_forward.1} parent=63 // pred_check_branch
        %2159 = sbr.rel (%p2157) target = $region68
      $region67: #{one_conv_forward.1} parent=63 // pred_region
        %s2160 = smul.u32 2, %s23
        %p2161 = scmp.lt.s32.totalorder %s2160, 3
        %s2162 = scalar_select %p2161, %s2160, 3
        %s2163 = smul.addr %s2162, 4
        %s2164 = scalar_lea.vmem %s9, %s2163
      $region68: #{one_conv_forward.1} parent=63 // pred_fallthru
        _
    $region64: #{one_conv_forward.1} parent=5 // pred_fallthru
      _
  $region6: #{one_conv_forward.1} parent=0 // loop_footer
    %s21 = sadd.s32 1, %s17
  $region7: #{one_conv_forward.1} parent=0 // loop_footer_branch
    %16 = sbr.rel target = $region3
  $region8: #{one_conv_forward.1} parent=0 // loop_exit
    _

</llo_original>
